<compile_context>
chip_gen: v7x
topology: tpu7x:2x2x1
jax: 0.10.0
libtpu: 0.0.40
codegen_flags: <defaults>
</compile_context>

<pallas_src>
import jax
import jax.numpy as jnp
from jax.experimental import pallas as pl
from jax.experimental.pallas import tpu as pltpu


def _fused_kernel(x226_ref, x219_ref, sb1_ref, w_ref, b2_ref, o_ref):
    # Per-channel BN1 scale/bias packed as columns of sb1 (Cin, 2).
    s1 = sb1_ref[:, 0:1]
    b1 = sb1_ref[:, 1:2]
    # BN1 (folded) on x226, residual add with x219, ReLU — all f32 (exact).
    h = x219_ref[...] + x226_ref[...] * s1 + b1
    h = jnp.maximum(h, 0.0).astype(jnp.bfloat16)
    # 1x1 conv == channel matmul: (tile_co, Cin) @ (Cin, P), bf16 inputs,
    # f32 accumulation on the MXU. BN2 scale is pre-folded into w; only the
    # (tile_co, 1) bias remains.
    y = jnp.dot(w_ref[...], h, preferred_element_type=jnp.float32)
    o_ref[...] = (y + b2_ref[...]).astype(o_ref.dtype)


def fold_params(bn1, conv_w, bn2, eps=1e-5):
    """One-time constant folding of BN params and conv weight (inference).

    Returns (sb1, w_folded, b2):
      sb1      : (Cin, 2) f32, columns = [scale1, bias1]
      w_folded : (Cout, Cin) bf16, BN2 scale folded into rows
      b2       : (Cout, 1) f32
    Do this once and reuse across calls.
    """
    s1 = bn1["gamma"] / jnp.sqrt(bn1["var"] + eps)
    b1 = bn1["beta"] - bn1["mean"] * s1
    s2 = bn2["gamma"] / jnp.sqrt(bn2["var"] + eps)
    b2 = bn2["beta"] - bn2["mean"] * s2
    Cout, Cin = conv_w.shape[0], conv_w.shape[1]
    # (w * s2) @ h + b2 == s2 * (w @ h) + b2
    w_folded = (conv_w.reshape(Cout, Cin) * s2[:, None]).astype(jnp.bfloat16)
    sb1 = jnp.stack([s1, b1], axis=1)  # (Cin, 2)
    return sb1, w_folded, b2.reshape(Cout, 1)


def fused_bn_add_relu_conv_bn(x226, x219, sb1, w_folded, b2):
    """x226, x219: NCHW float32 with N == 1 (channel-major reshape shortcut).

    sb1, w_folded, b2 come from fold_params().
    """
    N, C, H, W = x226.shape
    assert N == 1, "(C, P) reshape shortcut is only valid for N=1"
    P = H * W
    Cout, Cin = w_folded.shape

    # Two output-row tiles: lets Pallas double-buffer the weight halves and
    # the output writeback, and on v7x the "parallel" axis puts one tile on
    # each TensorCore. Keep the tile count low (per-step overhead ~0.35 us).
    if Cout % 2 == 0 and (Cout // 2) % 8 == 0:
        tile_co = Cout // 2
    else:
        tile_co = Cout
    n_tiles = Cout // tile_co

    # NCHW with N=1 -> (C, P): free reshape, no transpose / HBM round-trip.
    x226_f = x226.reshape(C, P)
    x219_f = x219.reshape(C, P)

    # Advisory cost for XLA scheduling around the custom call.
    cost = pl.CostEstimate(
        flops=2 * Cout * Cin * P,
        transcendentals=0,
        bytes_accessed=(2 * Cin * P * 4       # x226, x219 (f32)
                        + Cout * Cin * 2      # folded weight (bf16)
                        + Cout * P * 4        # output (f32)
                        + Cin * 2 * 4 + Cout * 4),  # per-channel vectors
    )

    # Live VMEM (double-buffered): ~2 x (339+339) KB activations + 2 x 187 KB
    # weight halves + 2 x 169 KB output tiles ~= 1.7 MB — fits every
    # generation's scoped VMEM default with huge headroom; no override needed.
    out_flat = pl.pallas_call(
        _fused_kernel,
        out_shape=jax.ShapeDtypeStruct((Cout, P), jnp.float32),
        grid=(n_tiles,),
        in_specs=[
            pl.BlockSpec((Cin, P), lambda j: (0, 0)),        # x226 (resident)
            pl.BlockSpec((Cin, P), lambda j: (0, 0)),        # x219 (resident)
            pl.BlockSpec((Cin, 2), lambda j: (0, 0)),        # s1/b1 packed
            pl.BlockSpec((tile_co, Cin), lambda j: (j, 0)),  # weight tile
            pl.BlockSpec((tile_co, 1), lambda j: (j, 0)),    # bias2 tile
        ],
        out_specs=pl.BlockSpec((tile_co, P), lambda j: (j, 0)),
        compiler_params=pltpu.CompilerParams(
            dimension_semantics=("parallel",)),
        cost_estimate=cost,
    )(x226_f, x219_f, sb1, w_folded, b2)

    # (Cout, P) -> NCHW (free reshape for N=1).
    return out_flat.reshape(N, Cout, H, W)


def _reference(x226, x219, bn1, conv_w, bn2, eps=1e-5):
    """Pure-f32 reference matching the PyTorch module (eval mode)."""
    def bn(x, p):
        s = p["gamma"] / jnp.sqrt(p["var"] + eps)
        b = p["beta"] - p["mean"] * s
        return x * s[None, :, None, None] + b[None, :, None, None]

    h = jnp.maximum(x219 + bn(x226, bn1), 0.0)
    y = jax.lax.conv_general_dilated(h, conv_w, (1, 1), "VALID",
                                     dimension_numbers=("NCHW", "OIHW", "NCHW"))
    return bn(y, bn2)


def _reference_bf16(x226, x219, sb1, w_folded, b2):
    """Same math as the kernel (bf16 matmul inputs) in plain JAX — tight check."""
    N, C, H, W = x226.shape
    P = H * W
    s1 = sb1[:, 0:1]
    b1 = sb1[:, 1:2]
    h = jnp.maximum(x219.reshape(C, P) + x226.reshape(C, P) * s1 + b1, 0.0)
    y = jnp.dot(w_folded, h.astype(jnp.bfloat16),
                preferred_element_type=jnp.float32) + b2
    return y.reshape(N, -1, H, W)


if __name__ == "__main__":
    key = jax.random.PRNGKey(0)
    N, C, H, W = 1, 432, 14, 14
    ks = jax.random.split(key, 12)

    x226 = jax.random.normal(ks[0], (N, C, H, W), jnp.float32)
    x219 = jax.random.normal(ks[1], (N, C, H, W), jnp.float32)

    bn1 = dict(
        gamma=jax.random.normal(ks[2], (C,), jnp.float32) * 0.1 + 1.0,
        beta=jax.random.normal(ks[3], (C,), jnp.float32) * 0.1,
        mean=jax.random.normal(ks[4], (C,), jnp.float32) * 0.1,
        var=jax.random.uniform(ks[5], (C,), jnp.float32, 0.5, 1.5),
    )
    conv_w = jax.random.normal(ks[6], (C, C, 1, 1), jnp.float32) * 0.05
    bn2 = dict(
        gamma=jax.random.normal(ks[7], (C,), jnp.float32) * 0.1 + 1.0,
        beta=jax.random.normal(ks[8], (C,), jnp.float32) * 0.1,
        mean=jax.random.normal(ks[9], (C,), jnp.float32) * 0.1,
        var=jax.random.uniform(ks[10], (C,), jnp.float32, 0.5, 1.5),
    )

    # Fold BN params / conv weight once (amortized across calls in inference).
    sb1, w_folded, b2 = jax.block_until_ready(fold_params(bn1, conv_w, bn2))

    run = jax.jit(fused_bn_add_relu_conv_bn)
    out = jax.block_until_ready(run(x226, x219, sb1, w_folded, b2))
    assert out.shape == (N, C, H, W)

    # Tight check: kernel vs. the same bf16-input math in plain JAX.
    ref_bf16 = jax.block_until_ready(
        _reference_bf16(x226, x219, sb1, w_folded, b2))
    assert jnp.allclose(out, ref_bf16, atol=5e-3, rtol=5e-3), float(
        jnp.max(jnp.abs(out - ref_bf16)))

    # Loose check: kernel vs. the pure-f32 module reference. Tolerance is
    # relaxed relative to the previous f32 version because the weight /
    # activation matmul inputs are now bf16 (K=432 contraction, f32 accum).
    ref = jax.block_until_ready(_reference(x226, x219, bn1, conv_w, bn2))
    assert jnp.allclose(out, ref, atol=1.5e-1, rtol=1.5e-2), float(
        jnp.max(jnp.abs(out - ref)))

    print("KERNEL_OK")
</pallas_src>

<mosaic_0001>
module attributes {stable_mosaic.version = 11 : i64} {
  func.func @_fused_kernel(%arg0: i32, %arg1: memref<432x196xf32, #tpu.memory_space<vmem>>, %arg2: memref<432x196xf32, #tpu.memory_space<vmem>>, %arg3: memref<432x2xf32, #tpu.memory_space<vmem>>, %arg4: memref<216x432xbf16, #tpu.memory_space<vmem>>, %arg5: memref<216x1xf32, #tpu.memory_space<vmem>>, %arg6: memref<216x196xf32, #tpu.memory_space<vmem>>) attributes {dimension_semantics = [#tpu.dimension_semantics<parallel>], iteration_bounds = array<i64: 2>, scalar_prefetch = 0 : i64, scratch_operands = 0 : i64, tpu.core_type = #tpu.core_type<tc>, window_params = [{pipeline_mode = #tpu.pipeline_mode<synchronous>, transform_indices = @transform_0, window_bounds = array<i64: 432, 196>}, {pipeline_mode = #tpu.pipeline_mode<synchronous>, transform_indices = @transform_1, window_bounds = array<i64: 432, 196>}, {pipeline_mode = #tpu.pipeline_mode<synchronous>, transform_indices = @transform_2, window_bounds = array<i64: 432, 2>}, {transform_indices = @transform_3, window_bounds = array<i64: 216, 432>}, {transform_indices = @transform_4, window_bounds = array<i64: 216, 1>}, {transform_indices = @transform_5, window_bounds = array<i64: 216, 196>}]} {
    %c0 = arith.constant 0 : index
    %c0_0 = arith.constant 0 : index
    %0 = vector.load %arg3[%c0, %c0_0] : memref<432x2xf32, #tpu.memory_space<vmem>>, vector<432x1xf32>
    %c0_1 = arith.constant 0 : index
    %c1 = arith.constant 1 : index
    %1 = vector.load %arg3[%c0_1, %c1] : memref<432x2xf32, #tpu.memory_space<vmem>>, vector<432x1xf32>
    %c0_2 = arith.constant 0 : index
    %c0_3 = arith.constant 0 : index
    %2 = vector.load %arg2[%c0_2, %c0_3] : memref<432x196xf32, #tpu.memory_space<vmem>>, vector<432x196xf32>
    %c0_4 = arith.constant 0 : index
    %c0_5 = arith.constant 0 : index
    %3 = vector.load %arg1[%c0_4, %c0_5] : memref<432x196xf32, #tpu.memory_space<vmem>>, vector<432x196xf32>
    %4 = vector.broadcast %0 : vector<432x1xf32> to vector<432x196xf32>
    %5 = arith.mulf %3, %4 : vector<432x196xf32>
    %6 = arith.addf %2, %5 : vector<432x196xf32>
    %7 = vector.broadcast %1 : vector<432x1xf32> to vector<432x196xf32>
    %8 = arith.addf %6, %7 : vector<432x196xf32>
    %cst = arith.constant 0.000000e+00 : f32
    %9 = vector.broadcast %cst : f32 to vector<432x196xf32>
    %10 = arith.maximumf %8, %9 : vector<432x196xf32>
    %11 = arith.truncf %10 : vector<432x196xf32> to vector<432x196xbf16>
    %c0_6 = arith.constant 0 : index
    %c0_7 = arith.constant 0 : index
    %12 = vector.load %arg4[%c0_6, %c0_7] : memref<216x432xbf16, #tpu.memory_space<vmem>>, vector<216x432xbf16>
    %cst_8 = arith.constant dense<0.000000e+00> : vector<216x196xf32>
    %13 = tpu.matmul %12, %11, %cst_8 {dimension_numbers = #tpu.dot_dimension_numbers<[1], [0], [0], [1], [0, 0, 1, 1], [], []>} : vector<216x432xbf16>, vector<432x196xbf16>, vector<216x196xf32> -> vector<216x196xf32>
    %c0_9 = arith.constant 0 : index
    %c0_10 = arith.constant 0 : index
    %14 = vector.load %arg5[%c0_9, %c0_10] : memref<216x1xf32, #tpu.memory_space<vmem>>, vector<216x1xf32>
    %15 = vector.broadcast %14 : vector<216x1xf32> to vector<216x196xf32>
    %16 = arith.addf %13, %15 : vector<216x196xf32>
    %c0_11 = arith.constant 0 : index
    %c0_12 = arith.constant 0 : index
    %17 = vector.load %arg6[%c0_11, %c0_12] : memref<216x196xf32, #tpu.memory_space<vmem>>, vector<216x196xf32>
    tpu.vector_store %arg6[%c0_11, %c0_12], %16 {strides = array<i32>} : memref<216x196xf32, #tpu.memory_space<vmem>>, vector<216x196xf32>,
    return
  }
  func.func @transform_0(%arg0: i32) -> (i32, i32) {
    %c0_i32 = arith.constant 0 : i32
    %c0_i32_0 = arith.constant 0 : i32
    %c0_i32_1 = arith.constant 0 : i32
    return %c0_i32, %c0_i32_0 : i32, i32
  }
  func.func @transform_1(%arg0: i32) -> (i32, i32) {
    %c0_i32 = arith.constant 0 : i32
    %c0_i32_0 = arith.constant 0 : i32
    %c0_i32_1 = arith.constant 0 : i32
    return %c0_i32, %c0_i32_0 : i32, i32
  }
  func.func @transform_2(%arg0: i32) -> (i32, i32) {
    %c0_i32 = arith.constant 0 : i32
    %c0_i32_0 = arith.constant 0 : i32
    %c0_i32_1 = arith.constant 0 : i32
    return %c0_i32, %c0_i32_0 : i32, i32
  }
  func.func @transform_3(%arg0: i32) -> (i32, i32) {
    %c0_i32 = arith.constant 0 : i32
    %c0_i32_0 = arith.constant 0 : i32
    return %arg0, %c0_i32 : i32, i32
  }
  func.func @transform_4(%arg0: i32) -> (i32, i32) {
    %c0_i32 = arith.constant 0 : i32
    %c0_i32_0 = arith.constant 0 : i32
    return %arg0, %c0_i32 : i32, i32
  }
  func.func @transform_5(%arg0: i32) -> (i32, i32) {
    %c0_i32 = arith.constant 0 : i32
    %c0_i32_0 = arith.constant 0 : i32
    return %arg0, %c0_i32 : i32, i32
  }
}

</mosaic_0001>

<llo_original>
// kernel: fused_bn_add_relu_conv_bn.1
$region0: #{fused_bn_add_relu_conv_bn.1}
  #allocation0 [shape = 'u32[]', space=smem, size = 0x4, offset = 0x4, fixed_abs, tag = 'smem constant byte address 0x4 - core index']
  #allocation1 [shape = 'u32[144,128]{1,0:T(1,128)}', space=vmem, size = 0x12000, scoped, tag = 'internal scratch']
  %s0 = inlined_call_operand.vmem [shape: f32[432,196], index: 0, kind: input, shape index: {}]
  %s1 = inlined_call_operand.vmem [shape: f32[432,196], index: 1, kind: input, shape index: {}]
  %s2 = inlined_call_operand.vmem [shape: f32[432,2], index: 2, kind: input, shape index: {}]
  %s3 = inlined_call_operand.vmem [shape: bf16[432,432], index: 3, kind: input, shape index: {}]
  %s4 = inlined_call_operand.vmem [shape: f32[432,1], index: 4, kind: input, shape index: {}]
  %s5 = inlined_call_operand.vmem [shape: f32[432,196], index: 5, kind: output, shape index: {}]
  %s6 = sld [smem:[#allocation0]]
  $region53: #{fused_bn_add_relu_conv_bn.1} parent=0
    _
  %s8 = ssub.s32 1, %s6
  %s9 = scalar_select 0, %s8, %s6
  loop: start=0, step=1, limit=4
  $region2: #{fused_bn_add_relu_conv_bn.1} parent=0 // loop_pre_header
    _
  $region3: #{fused_bn_add_relu_conv_bn.1} parent=0 // loop_header
    %s11 = sphi 0, %s15
    %p12 = scmp.ge.s32.totalorder %s11, 4
    %s19 = sphi 0, %s19
    %s21 = sphi 0, %s19
    %s22 = sphi 0, %s21
    %s36 = sphi 0, %s22
    %s40 = sphi 0, %s40
    %s42 = sphi 0, %s40
    %s43 = sphi 0, %s42
    %s57 = sphi 0, %s43
    %s61 = sphi 0, %s61
    %s63 = sphi 0, %s61
    %s64 = sphi 0, %s63
    %s78 = sphi 0, %s64
    %s84 = sphi 0, %s86
    %s87 = sphi 0, %s84
    %s88 = sphi 0, %s87
    %s104 = sphi 0, %s88
    %s110 = sphi 0, %s112
    %s113 = sphi 0, %s110
    %s114 = sphi 0, %s113
    %s130 = sphi 0, %s114
    %s136 = sphi 0, %s138
    %s139 = sphi 0, %s136
    %s140 = sphi 0, %s139
    %s156 = sphi 0, %s140
  $region4: #{fused_bn_add_relu_conv_bn.1} parent=0 // loop_header_branch
    %14 = sbr.rel (%p12) target = $region8
  $region5: #{fused_bn_add_relu_conv_bn.1} parent=0 // loop_body
    %s16 = ssub.s32 %s11, 1
    %s17 = ssub.s32 %s11, 2
    %s18 = sadd.s32 %s11, 1
    %s20 = sadd.s32 %s19, 1
    %p23 = scmp.eq.s32.totalorder %s11, 1
    %p24 = scmp.ne.s32.totalorder %s19, %s21
    %p25 = scmp.eq.s32.totalorder %s11, 0
    %p26 = por %p24, %p25
    %p27 = scmp.ne.s32.totalorder %s19, %s21
    %p28 = scmp.eq.s32.totalorder %s16, 1
    %p29 = por %p27, %p28
    %p30 = scmp.ne.s32.totalorder %s21, %s22
    %p31 = scmp.eq.s32.totalorder %s16, 0
    %p32 = por %p30, %p31
    %p33 = scmp.ne.s32.totalorder %s21, %s22
    %p34 = scmp.eq.s32.totalorder %s17, 1
    %p35 = por %p33, %p34
    %p37 = scmp.ne.s32.totalorder %s22, %s36
    %p38 = scmp.eq.s32.totalorder %s17, 0
    %p39 = por %p37, %p38
    %s41 = sadd.s32 %s40, 1
    %p44 = scmp.eq.s32.totalorder %s11, 1
    %p45 = scmp.ne.s32.totalorder %s40, %s42
    %p46 = scmp.eq.s32.totalorder %s11, 0
    %p47 = por %p45, %p46
    %p48 = scmp.ne.s32.totalorder %s40, %s42
    %p49 = scmp.eq.s32.totalorder %s16, 1
    %p50 = por %p48, %p49
    %p51 = scmp.ne.s32.totalorder %s42, %s43
    %p52 = scmp.eq.s32.totalorder %s16, 0
    %p53 = por %p51, %p52
    %p54 = scmp.ne.s32.totalorder %s42, %s43
    %p55 = scmp.eq.s32.totalorder %s17, 1
    %p56 = por %p54, %p55
    %p58 = scmp.ne.s32.totalorder %s43, %s57
    %p59 = scmp.eq.s32.totalorder %s17, 0
    %p60 = por %p58, %p59
    %s62 = sadd.s32 %s61, 1
    %p65 = scmp.eq.s32.totalorder %s11, 1
    %p66 = scmp.ne.s32.totalorder %s61, %s63
    %p67 = scmp.eq.s32.totalorder %s11, 0
    %p68 = por %p66, %p67
    %p69 = scmp.ne.s32.totalorder %s61, %s63
    %p70 = scmp.eq.s32.totalorder %s16, 1
    %p71 = por %p69, %p70
    %p72 = scmp.ne.s32.totalorder %s63, %s64
    %p73 = scmp.eq.s32.totalorder %s16, 0
    %p74 = por %p72, %p73
    %p75 = scmp.ne.s32.totalorder %s63, %s64
    %p76 = scmp.eq.s32.totalorder %s17, 1
    %p77 = por %p75, %p76
    %p79 = scmp.ne.s32.totalorder %s64, %s78
    %p80 = scmp.eq.s32.totalorder %s17, 0
    %p81 = por %p79, %p80
    %s82 = ssub.s32 %s11, %s18
    %p83 = scmp.eq.s32.totalorder %s82, 0
    %s85 = sadd.s32 %s84, 1
    %s86 = scalar_select %p83, %s84, %s85
    %p89 = pneg %p83
    %p90 = scmp.eq.s32.totalorder %s11, 1
    %p91 = por %p89, %p90
    %p92 = scmp.ne.s32.totalorder %s84, %s87
    %p93 = scmp.eq.s32.totalorder %s11, 0
    %p94 = por %p92, %p93
    %p95 = scmp.ne.s32.totalorder %s84, %s87
    %p96 = scmp.eq.s32.totalorder %s16, 1
    %p97 = por %p95, %p96
    %p98 = scmp.ne.s32.totalorder %s87, %s88
    %p99 = scmp.eq.s32.totalorder %s16, 0
    %p100 = por %p98, %p99
    %p101 = scmp.ne.s32.totalorder %s87, %s88
    %p102 = scmp.eq.s32.totalorder %s17, 1
    %p103 = por %p101, %p102
    %p105 = scmp.ne.s32.totalorder %s88, %s104
    %p106 = scmp.eq.s32.totalorder %s17, 0
    %p107 = por %p105, %p106
    %s108 = ssub.s32 %s11, %s18
    %p109 = scmp.eq.s32.totalorder %s108, 0
    %s111 = sadd.s32 %s110, 1
    %s112 = scalar_select %p109, %s110, %s111
    %p115 = pneg %p109
    %p116 = scmp.eq.s32.totalorder %s11, 1
    %p117 = por %p115, %p116
    %p118 = scmp.ne.s32.totalorder %s110, %s113
    %p119 = scmp.eq.s32.totalorder %s11, 0
    %p120 = por %p118, %p119
    %p121 = scmp.ne.s32.totalorder %s110, %s113
    %p122 = scmp.eq.s32.totalorder %s16, 1
    %p123 = por %p121, %p122
    %p124 = scmp.ne.s32.totalorder %s113, %s114
    %p125 = scmp.eq.s32.totalorder %s16, 0
    %p126 = por %p124, %p125
    %p127 = scmp.ne.s32.totalorder %s113, %s114
    %p128 = scmp.eq.s32.totalorder %s17, 1
    %p129 = por %p127, %p128
    %p131 = scmp.ne.s32.totalorder %s114, %s130
    %p132 = scmp.eq.s32.totalorder %s17, 0
    %p133 = por %p131, %p132
    %s134 = ssub.s32 %s11, %s18
    %p135 = scmp.eq.s32.totalorder %s134, 0
    %s137 = sadd.s32 %s136, 1
    %s138 = scalar_select %p135, %s136, %s137
    %p141 = pneg %p135
    %p142 = scmp.eq.s32.totalorder %s11, 1
    %p143 = por %p141, %p142
    %p144 = scmp.ne.s32.totalorder %s136, %s139
    %p145 = scmp.eq.s32.totalorder %s11, 0
    %p146 = por %p144, %p145
    %p147 = scmp.ne.s32.totalorder %s136, %s139
    %p148 = scmp.eq.s32.totalorder %s16, 1
    %p149 = por %p147, %p148
    %p150 = scmp.ne.s32.totalorder %s139, %s140
    %p151 = scmp.eq.s32.totalorder %s16, 0
    %p152 = por %p150, %p151
    %p153 = scmp.ne.s32.totalorder %s139, %s140
    %p154 = scmp.eq.s32.totalorder %s17, 1
    %p155 = por %p153, %p154
    %p157 = scmp.ne.s32.totalorder %s140, %s156
    %p158 = scmp.eq.s32.totalorder %s17, 0
    %p159 = por %p157, %p158
    %p160 = scmp.le.s32.totalorder 1, %s11
    %p161 = scmp.lt.s32.totalorder %s11, 3
    %p162 = pnand %p160, %p161
    %p163 = pneg %p162
    // Predicated region
    $region9: #{fused_bn_add_relu_conv_bn.1} parent=5 // pred_check
      _
    $region10: #{fused_bn_add_relu_conv_bn.1} parent=5 // pred_check_branch
      %165 = sbr.rel (%p162) target = $region12
    $region11: #{fused_bn_add_relu_conv_bn.1} parent=5 // pred_region
      %s166 = ssub.s32 %s11, 1
      // Predicated region
      $region13: #{fused_bn_add_relu_conv_bn.1} parent=11 // pred_check
        %p167 = pneg %p32
      $region14: #{fused_bn_add_relu_conv_bn.1} parent=11 // pred_check_branch
        %169 = sbr.rel (%p167) target = $region16
      $region15: #{fused_bn_add_relu_conv_bn.1} parent=11 // pred_region
        _
      $region16: #{fused_bn_add_relu_conv_bn.1} parent=11 // pred_fallthru
        _
      // Predicated region
      $region17: #{fused_bn_add_relu_conv_bn.1} parent=11 // pred_check
        %p170 = pneg %p53
      $region18: #{fused_bn_add_relu_conv_bn.1} parent=11 // pred_check_branch
        %172 = sbr.rel (%p170) target = $region20
      $region19: #{fused_bn_add_relu_conv_bn.1} parent=11 // pred_region
        _
      $region20: #{fused_bn_add_relu_conv_bn.1} parent=11 // pred_fallthru
        _
      // Predicated region
      $region21: #{fused_bn_add_relu_conv_bn.1} parent=11 // pred_check
        %p173 = pneg %p74
      $region22: #{fused_bn_add_relu_conv_bn.1} parent=11 // pred_check_branch
        %175 = sbr.rel (%p173) target = $region24
      $region23: #{fused_bn_add_relu_conv_bn.1} parent=11 // pred_region
        _
      $region24: #{fused_bn_add_relu_conv_bn.1} parent=11 // pred_fallthru
        _
    $region12: #{fused_bn_add_relu_conv_bn.1} parent=5 // pred_fallthru
      _
    %p176 = scmp.lt.s32.totalorder %s11, 2
    // Predicated region
    $region25: #{fused_bn_add_relu_conv_bn.1} parent=5 // pred_check
      %p177 = pneg %p176
    $region26: #{fused_bn_add_relu_conv_bn.1} parent=5 // pred_check_branch
      %179 = sbr.rel (%p177) target = $region28
    $region27: #{fused_bn_add_relu_conv_bn.1} parent=5 // pred_region
      // Predicated region
      $region29: #{fused_bn_add_relu_conv_bn.1} parent=27 // pred_check
        %p180 = pneg %p94
      $region30: #{fused_bn_add_relu_conv_bn.1} parent=27 // pred_check_branch
        %182 = sbr.rel (%p180) target = $region32
      $region31: #{fused_bn_add_relu_conv_bn.1} parent=27 // pred_region
        %s183 = smul.u32 27, %s11
        %p184 = scmp.lt.s32.totalorder %s183, 53
        %s185 = scalar_select %p184, %s183, 53
        %s186 = smul.addr %s185, 4
        %s187 = smul.addr %s186, 4
        %s188 = scalar_lea.vmem %s3, %s187
        %s189 = smul.u32 27, %s11
      $region32: #{fused_bn_add_relu_conv_bn.1} parent=27 // pred_fallthru
        _
      // Predicated region
      $region33: #{fused_bn_add_relu_conv_bn.1} parent=27 // pred_check
        %p190 = pneg %p120
      $region34: #{fused_bn_add_relu_conv_bn.1} parent=27 // pred_check_branch
        %192 = sbr.rel (%p190) target = $region36
      $region35: #{fused_bn_add_relu_conv_bn.1} parent=27 // pred_region
        %s193 = smul.u32 27, %s11
        %p194 = scmp.lt.s32.totalorder %s193, 53
        %s195 = scalar_select %p194, %s193, 53
        %s196 = smul.addr %s195, 8
        %s197 = scalar_lea.vmem %s4, %s196
        %s198 = smul.u32 27, %s11
      $region36: #{fused_bn_add_relu_conv_bn.1} parent=27 // pred_fallthru
        _
    $region28: #{fused_bn_add_relu_conv_bn.1} parent=5 // pred_fallthru
      _
    %p199 = scmp.le.s32.totalorder 1, %s11
    %p200 = scmp.lt.s32.totalorder %s11, 3
    %p201 = pnand %p199, %p200
    %p202 = pneg %p201
    // Predicated region
    $region37: #{fused_bn_add_relu_conv_bn.1} parent=5 // pred_check
      _
    $region38: #{fused_bn_add_relu_conv_bn.1} parent=5 // pred_check_branch
      %204 = sbr.rel (%p201) target = $region40
    $region39: #{fused_bn_add_relu_conv_bn.1} parent=5 // pred_region
      %s205 = ssub.s32 %s11, 1
      %p206 = pneg %p32
      %p207 = pneg %p29
      %p208 = pneg %p53
      %p209 = pneg %p50
      %p210 = pneg %p74
      %p211 = pneg %p71
      %s212 = smul.u32 27, %s16
      %p213 = scmp.lt.s32.totalorder %s212, 53
      %s214 = scalar_select %p213, %s212, 53
      %s215 = smul.addr %s214, 4
      %s216 = smul.addr %s215, 4
      %s217 = scalar_lea.vmem %s3, %s216
      %p218 = pneg %p100
      %p219 = pneg %p97
      %s220 = smul.u32 27, %s16
      %p221 = scmp.lt.s32.totalorder %s220, 53
      %s222 = scalar_select %p221, %s220, 53
      %s223 = smul.addr %s222, 8
      %s224 = scalar_lea.vmem %s4, %s223
      %p225 = pneg %p126
      %p226 = pneg %p123
      %p227 = pneg %p152
      %p228 = pneg %p149
      %s229 = smul.u32 27, %s16
      %p230 = scmp.lt.s32.totalorder %s229, 53
      %s231 = scalar_select %p230, %s229, 53
      %s232 = smul.addr %s231, 2
      %s233 = smul.addr %s232, 8
      %s234 = scalar_lea.vmem %s5, %s233
      %s235 = smul.u32 27, %s16
      %p236 = scmp.lt.s32.totalorder %s235, 53
      %s237 = scalar_select %p236, %s235, 53
      %s238 = smul.addr %s237, 4
      %s239 = smul.addr %s238, 4
      %s240 = scalar_lea.vmem %s3, %s239
      %s241 = smul.u32 27, %s16
      %s242 = smul.u32 27, %s16
      %p243 = scmp.lt.s32.totalorder %s242, 53
      %s244 = scalar_select %p243, %s242, 53
      %s245 = smul.addr %s244, 8
      %s246 = scalar_lea.vmem %s4, %s245
      %s247 = smul.u32 27, %s16
      %s248 = smul.u32 27, %s16
      %p249 = scmp.lt.s32.totalorder %s248, 53
      %s250 = scalar_select %p249, %s248, 53
      %s251 = smul.addr %s250, 2
      %s252 = smul.addr %s251, 8
      %s253 = scalar_lea.vmem %s5, %s252
      %s254 = smul.u32 27, %s16
      %v256 = vld [vmem:[%s2] sm:$0xff]
      %v257 = vld [vmem:[%s2 + $0x8] sm:$0xff]
      %v258 = vld [vmem:[%s2 + $0x10] sm:$0xff]
      %v259 = vld [vmem:[%s2 + $0x18] sm:$0xff]
      %v260 = vld [vmem:[%s2 + $0x20] sm:$0xff]
      %v261 = vld [vmem:[%s2 + $0x28] sm:$0xff]
      %v262 = vld [vmem:[%s2 + $0x30] sm:$0xff]
      %v263 = vld [vmem:[%s2 + $0x38] sm:$0xff]
      %v264 = vld [vmem:[%s2 + $0x40] sm:$0xff]
      %v265 = vld [vmem:[%s2 + $0x48] sm:$0xff]
      %v266 = vld [vmem:[%s2 + $0x50] sm:$0xff]
      %v267 = vld [vmem:[%s2 + $0x58] sm:$0xff]
      %v268 = vld [vmem:[%s2 + $0x60] sm:$0xff]
      %v269 = vld [vmem:[%s2 + $0x68] sm:$0xff]
      %v270 = vld [vmem:[%s2 + $0x70] sm:$0xff]
      %v271 = vld [vmem:[%s2 + $0x78] sm:$0xff]
      %v272 = vld [vmem:[%s2 + $0x80] sm:$0xff]
      %v273 = vld [vmem:[%s2 + $0x88] sm:$0xff]
      %v274 = vld [vmem:[%s2 + $0x90] sm:$0xff]
      %v275 = vld [vmem:[%s2 + $0x98] sm:$0xff]
      %v276 = vld [vmem:[%s2 + $0xa0] sm:$0xff]
      %v277 = vld [vmem:[%s2 + $0xa8] sm:$0xff]
      %v278 = vld [vmem:[%s2 + $0xb0] sm:$0xff]
      %v279 = vld [vmem:[%s2 + $0xb8] sm:$0xff]
      %v280 = vld [vmem:[%s2 + $0xc0] sm:$0xff]
      %v281 = vld [vmem:[%s2 + $0xc8] sm:$0xff]
      %v282 = vld [vmem:[%s2 + $0xd0] sm:$0xff]
      %v283 = vld [vmem:[%s2 + $0xd8] sm:$0xff]
      %v284 = vld [vmem:[%s2 + $0xe0] sm:$0xff]
      %v285 = vld [vmem:[%s2 + $0xe8] sm:$0xff]
      %v286 = vld [vmem:[%s2 + $0xf0] sm:$0xff]
      %v287 = vld [vmem:[%s2 + $0xf8] sm:$0xff]
      %v288 = vld [vmem:[%s2 + $0x100] sm:$0xff]
      %v289 = vld [vmem:[%s2 + $0x108] sm:$0xff]
      %v290 = vld [vmem:[%s2 + $0x110] sm:$0xff]
      %v291 = vld [vmem:[%s2 + $0x118] sm:$0xff]
      %v292 = vld [vmem:[%s2 + $0x120] sm:$0xff]
      %v293 = vld [vmem:[%s2 + $0x128] sm:$0xff]
      %v294 = vld [vmem:[%s2 + $0x130] sm:$0xff]
      %v295 = vld [vmem:[%s2 + $0x138] sm:$0xff]
      %v296 = vld [vmem:[%s2 + $0x140] sm:$0xff]
      %v297 = vld [vmem:[%s2 + $0x148] sm:$0xff]
      %v298 = vld [vmem:[%s2 + $0x150] sm:$0xff]
      %v299 = vld [vmem:[%s2 + $0x158] sm:$0xff]
      %v300 = vld [vmem:[%s2 + $0x160] sm:$0xff]
      %v301 = vld [vmem:[%s2 + $0x168] sm:$0xff]
      %v302 = vld [vmem:[%s2 + $0x170] sm:$0xff]
      %v303 = vld [vmem:[%s2 + $0x178] sm:$0xff]
      %v304 = vld [vmem:[%s2 + $0x180] sm:$0xff]
      %v305 = vld [vmem:[%s2 + $0x188] sm:$0xff]
      %v306 = vld [vmem:[%s2 + $0x190] sm:$0xff]
      %v307 = vld [vmem:[%s2 + $0x198] sm:$0xff]
      %v308 = vld [vmem:[%s2 + $0x1a0] sm:$0xff]
      %v309 = vld [vmem:[%s2 + $0x1a8] sm:$0xff]
      %v310 = vld [vmem:[%s1] sm:$0xff]
      %v311 = vld [vmem:[%s1 + $0x8] sm:$0xff]
      %v312 = vld [vmem:[%s1 + $0x10] sm:$0xff]
      %v313 = vld [vmem:[%s1 + $0x18] sm:$0xff]
      %v314 = vld [vmem:[%s1 + $0x20] sm:$0xff]
      %v315 = vld [vmem:[%s1 + $0x28] sm:$0xff]
      %v316 = vld [vmem:[%s1 + $0x30] sm:$0xff]
      %v317 = vld [vmem:[%s1 + $0x38] sm:$0xff]
      %v318 = vld [vmem:[%s1 + $0x40] sm:$0xff]
      %v319 = vld [vmem:[%s1 + $0x48] sm:$0xff]
      %v320 = vld [vmem:[%s1 + $0x50] sm:$0xff]
      %v321 = vld [vmem:[%s1 + $0x58] sm:$0xff]
      %v322 = vld [vmem:[%s1 + $0x60] sm:$0xff]
      %v323 = vld [vmem:[%s1 + $0x68] sm:$0xff]
      %v324 = vld [vmem:[%s1 + $0x70] sm:$0xff]
      %v325 = vld [vmem:[%s1 + $0x78] sm:$0xff]
      %v326 = vld [vmem:[%s1 + $0x80] sm:$0xff]
      %v327 = vld [vmem:[%s1 + $0x88] sm:$0xff]
      %v328 = vld [vmem:[%s1 + $0x90] sm:$0xff]
      %v329 = vld [vmem:[%s1 + $0x98] sm:$0xff]
      %v330 = vld [vmem:[%s1 + $0xa0] sm:$0xff]
      %v331 = vld [vmem:[%s1 + $0xa8] sm:$0xff]
      %v332 = vld [vmem:[%s1 + $0xb0] sm:$0xff]
      %v333 = vld [vmem:[%s1 + $0xb8] sm:$0xff]
      %v334 = vld [vmem:[%s1 + $0xc0] sm:$0xff]
      %v335 = vld [vmem:[%s1 + $0xc8] sm:$0xff]
      %v336 = vld [vmem:[%s1 + $0xd0] sm:$0xff]
      %v337 = vld [vmem:[%s1 + $0xd8] sm:$0xff]
      %v338 = vld [vmem:[%s1 + $0xe0] sm:$0xff]
      %v339 = vld [vmem:[%s1 + $0xe8] sm:$0xff]
      %v340 = vld [vmem:[%s1 + $0xf0] sm:$0xff]
      %v341 = vld [vmem:[%s1 + $0xf8] sm:$0xff]
      %v342 = vld [vmem:[%s1 + $0x100] sm:$0xff]
      %v343 = vld [vmem:[%s1 + $0x108] sm:$0xff]
      %v344 = vld [vmem:[%s1 + $0x110] sm:$0xff]
      %v345 = vld [vmem:[%s1 + $0x118] sm:$0xff]
      %v346 = vld [vmem:[%s1 + $0x120] sm:$0xff]
      %v347 = vld [vmem:[%s1 + $0x128] sm:$0xff]
      %v348 = vld [vmem:[%s1 + $0x130] sm:$0xff]
      %v349 = vld [vmem:[%s1 + $0x138] sm:$0xff]
      %v350 = vld [vmem:[%s1 + $0x140] sm:$0xff]
      %v351 = vld [vmem:[%s1 + $0x148] sm:$0xff]
      %v352 = vld [vmem:[%s1 + $0x150] sm:$0xff]
      %v353 = vld [vmem:[%s1 + $0x158] sm:$0xff]
      %v354 = vld [vmem:[%s1 + $0x160] sm:$0xff]
      %v355 = vld [vmem:[%s1 + $0x168] sm:$0xff]
      %v356 = vld [vmem:[%s1 + $0x170] sm:$0xff]
      %v357 = vld [vmem:[%s1 + $0x178] sm:$0xff]
      %v358 = vld [vmem:[%s1 + $0x180] sm:$0xff]
      %v359 = vld [vmem:[%s1 + $0x188] sm:$0xff]
      %v360 = vld [vmem:[%s1 + $0x190] sm:$0xff]
      %v361 = vld [vmem:[%s1 + $0x198] sm:$0xff]
      %v362 = vld [vmem:[%s1 + $0x1a0] sm:$0xff]
      %v363 = vld [vmem:[%s1 + $0x1a8] sm:$0xff]
      %v364 = vld [vmem:[%s1 + $0x1b0] sm:$0xff]
      %v365 = vld [vmem:[%s1 + $0x1b8] sm:$0xff]
      %v366 = vld [vmem:[%s1 + $0x1c0] sm:$0xff]
      %v367 = vld [vmem:[%s1 + $0x1c8] sm:$0xff]
      %v368 = vld [vmem:[%s1 + $0x1d0] sm:$0xff]
      %v369 = vld [vmem:[%s1 + $0x1d8] sm:$0xff]
      %v370 = vld [vmem:[%s1 + $0x1e0] sm:$0xff]
      %v371 = vld [vmem:[%s1 + $0x1e8] sm:$0xff]
      %v372 = vld [vmem:[%s1 + $0x1f0] sm:$0xff]
      %v373 = vld [vmem:[%s1 + $0x1f8] sm:$0xff]
      %v374 = vld [vmem:[%s1 + $0x200] sm:$0xff]
      %v375 = vld [vmem:[%s1 + $0x208] sm:$0xff]
      %v376 = vld [vmem:[%s1 + $0x210] sm:$0xff]
      %v377 = vld [vmem:[%s1 + $0x218] sm:$0xff]
      %v378 = vld [vmem:[%s1 + $0x220] sm:$0xff]
      %v379 = vld [vmem:[%s1 + $0x228] sm:$0xff]
      %v380 = vld [vmem:[%s1 + $0x230] sm:$0xff]
      %v381 = vld [vmem:[%s1 + $0x238] sm:$0xff]
      %v382 = vld [vmem:[%s1 + $0x240] sm:$0xff]
      %v383 = vld [vmem:[%s1 + $0x248] sm:$0xff]
      %v384 = vld [vmem:[%s1 + $0x250] sm:$0xff]
      %v385 = vld [vmem:[%s1 + $0x258] sm:$0xff]
      %v386 = vld [vmem:[%s1 + $0x260] sm:$0xff]
      %v387 = vld [vmem:[%s1 + $0x268] sm:$0xff]
      %v388 = vld [vmem:[%s1 + $0x270] sm:$0xff]
      %v389 = vld [vmem:[%s1 + $0x278] sm:$0xff]
      %v390 = vld [vmem:[%s1 + $0x280] sm:$0xff]
      %v391 = vld [vmem:[%s1 + $0x288] sm:$0xff]
      %v392 = vld [vmem:[%s1 + $0x290] sm:$0xff]
      %v393 = vld [vmem:[%s1 + $0x298] sm:$0xff]
      %v394 = vld [vmem:[%s1 + $0x2a0] sm:$0xff]
      %v395 = vld [vmem:[%s1 + $0x2a8] sm:$0xff]
      %v396 = vld [vmem:[%s1 + $0x2b0] sm:$0xff]
      %v397 = vld [vmem:[%s1 + $0x2b8] sm:$0xff]
      %v398 = vld [vmem:[%s1 + $0x2c0] sm:$0xff]
      %v399 = vld [vmem:[%s1 + $0x2c8] sm:$0xff]
      %v400 = vld [vmem:[%s1 + $0x2d0] sm:$0xff]
      %v401 = vld [vmem:[%s1 + $0x2d8] sm:$0xff]
      %v402 = vld [vmem:[%s1 + $0x2e0] sm:$0xff]
      %v403 = vld [vmem:[%s1 + $0x2e8] sm:$0xff]
      %v404 = vld [vmem:[%s1 + $0x2f0] sm:$0xff]
      %v405 = vld [vmem:[%s1 + $0x2f8] sm:$0xff]
      %v406 = vld [vmem:[%s1 + $0x300] sm:$0xff]
      %v407 = vld [vmem:[%s1 + $0x308] sm:$0xff]
      %v408 = vld [vmem:[%s1 + $0x310] sm:$0xff]
      %v409 = vld [vmem:[%s1 + $0x318] sm:$0xff]
      %v410 = vld [vmem:[%s1 + $0x320] sm:$0xff]
      %v411 = vld [vmem:[%s1 + $0x328] sm:$0xff]
      %v412 = vld [vmem:[%s1 + $0x330] sm:$0xff]
      %v413 = vld [vmem:[%s1 + $0x338] sm:$0xff]
      %v414 = vld [vmem:[%s1 + $0x340] sm:$0xff]
      %v415 = vld [vmem:[%s1 + $0x348] sm:$0xff]
      %v416 = vld [vmem:[%s1 + $0x350] sm:$0xff]
      %v417 = vld [vmem:[%s1 + $0x358] sm:$0xff]
      %v418 = vld [vmem:[%s0] sm:$0xff]
      %v419 = vld [vmem:[%s0 + $0x8] sm:$0xff]
      %v420 = vld [vmem:[%s0 + $0x10] sm:$0xff]
      %v421 = vld [vmem:[%s0 + $0x18] sm:$0xff]
      %v422 = vld [vmem:[%s0 + $0x20] sm:$0xff]
      %v423 = vld [vmem:[%s0 + $0x28] sm:$0xff]
      %v424 = vld [vmem:[%s0 + $0x30] sm:$0xff]
      %v425 = vld [vmem:[%s0 + $0x38] sm:$0xff]
      %v426 = vld [vmem:[%s0 + $0x40] sm:$0xff]
      %v427 = vld [vmem:[%s0 + $0x48] sm:$0xff]
      %v428 = vld [vmem:[%s0 + $0x50] sm:$0xff]
      %v429 = vld [vmem:[%s0 + $0x58] sm:$0xff]
      %v430 = vld [vmem:[%s0 + $0x60] sm:$0xff]
      %v431 = vld [vmem:[%s0 + $0x68] sm:$0xff]
      %v432 = vld [vmem:[%s0 + $0x70] sm:$0xff]
      %v433 = vld [vmem:[%s0 + $0x78] sm:$0xff]
      %v434 = vld [vmem:[%s0 + $0x80] sm:$0xff]
      %v435 = vld [vmem:[%s0 + $0x88] sm:$0xff]
      %v436 = vld [vmem:[%s0 + $0x90] sm:$0xff]
      %v437 = vld [vmem:[%s0 + $0x98] sm:$0xff]
      %v438 = vld [vmem:[%s0 + $0xa0] sm:$0xff]
      %v439 = vld [vmem:[%s0 + $0xa8] sm:$0xff]
      %v440 = vld [vmem:[%s0 + $0xb0] sm:$0xff]
      %v441 = vld [vmem:[%s0 + $0xb8] sm:$0xff]
      %v442 = vld [vmem:[%s0 + $0xc0] sm:$0xff]
      %v443 = vld [vmem:[%s0 + $0xc8] sm:$0xff]
      %v444 = vld [vmem:[%s0 + $0xd0] sm:$0xff]
      %v445 = vld [vmem:[%s0 + $0xd8] sm:$0xff]
      %v446 = vld [vmem:[%s0 + $0xe0] sm:$0xff]
      %v447 = vld [vmem:[%s0 + $0xe8] sm:$0xff]
      %v448 = vld [vmem:[%s0 + $0xf0] sm:$0xff]
      %v449 = vld [vmem:[%s0 + $0xf8] sm:$0xff]
      %v450 = vld [vmem:[%s0 + $0x100] sm:$0xff]
      %v451 = vld [vmem:[%s0 + $0x108] sm:$0xff]
      %v452 = vld [vmem:[%s0 + $0x110] sm:$0xff]
      %v453 = vld [vmem:[%s0 + $0x118] sm:$0xff]
      %v454 = vld [vmem:[%s0 + $0x120] sm:$0xff]
      %v455 = vld [vmem:[%s0 + $0x128] sm:$0xff]
      %v456 = vld [vmem:[%s0 + $0x130] sm:$0xff]
      %v457 = vld [vmem:[%s0 + $0x138] sm:$0xff]
      %v458 = vld [vmem:[%s0 + $0x140] sm:$0xff]
      %v459 = vld [vmem:[%s0 + $0x148] sm:$0xff]
      %v460 = vld [vmem:[%s0 + $0x150] sm:$0xff]
      %v461 = vld [vmem:[%s0 + $0x158] sm:$0xff]
      %v462 = vld [vmem:[%s0 + $0x160] sm:$0xff]
      %v463 = vld [vmem:[%s0 + $0x168] sm:$0xff]
      %v464 = vld [vmem:[%s0 + $0x170] sm:$0xff]
      %v465 = vld [vmem:[%s0 + $0x178] sm:$0xff]
      %v466 = vld [vmem:[%s0 + $0x180] sm:$0xff]
      %v467 = vld [vmem:[%s0 + $0x188] sm:$0xff]
      %v468 = vld [vmem:[%s0 + $0x190] sm:$0xff]
      %v469 = vld [vmem:[%s0 + $0x198] sm:$0xff]
      %v470 = vld [vmem:[%s0 + $0x1a0] sm:$0xff]
      %v471 = vld [vmem:[%s0 + $0x1a8] sm:$0xff]
      %v472 = vld [vmem:[%s0 + $0x1b0] sm:$0xff]
      %v473 = vld [vmem:[%s0 + $0x1b8] sm:$0xff]
      %v474 = vld [vmem:[%s0 + $0x1c0] sm:$0xff]
      %v475 = vld [vmem:[%s0 + $0x1c8] sm:$0xff]
      %v476 = vld [vmem:[%s0 + $0x1d0] sm:$0xff]
      %v477 = vld [vmem:[%s0 + $0x1d8] sm:$0xff]
      %v478 = vld [vmem:[%s0 + $0x1e0] sm:$0xff]
      %v479 = vld [vmem:[%s0 + $0x1e8] sm:$0xff]
      %v480 = vld [vmem:[%s0 + $0x1f0] sm:$0xff]
      %v481 = vld [vmem:[%s0 + $0x1f8] sm:$0xff]
      %v482 = vld [vmem:[%s0 + $0x200] sm:$0xff]
      %v483 = vld [vmem:[%s0 + $0x208] sm:$0xff]
      %v484 = vld [vmem:[%s0 + $0x210] sm:$0xff]
      %v485 = vld [vmem:[%s0 + $0x218] sm:$0xff]
      %v486 = vld [vmem:[%s0 + $0x220] sm:$0xff]
      %v487 = vld [vmem:[%s0 + $0x228] sm:$0xff]
      %v488 = vld [vmem:[%s0 + $0x230] sm:$0xff]
      %v489 = vld [vmem:[%s0 + $0x238] sm:$0xff]
      %v490 = vld [vmem:[%s0 + $0x240] sm:$0xff]
      %v491 = vld [vmem:[%s0 + $0x248] sm:$0xff]
      %v492 = vld [vmem:[%s0 + $0x250] sm:$0xff]
      %v493 = vld [vmem:[%s0 + $0x258] sm:$0xff]
      %v494 = vld [vmem:[%s0 + $0x260] sm:$0xff]
      %v495 = vld [vmem:[%s0 + $0x268] sm:$0xff]
      %v496 = vld [vmem:[%s0 + $0x270] sm:$0xff]
      %v497 = vld [vmem:[%s0 + $0x278] sm:$0xff]
      %v498 = vld [vmem:[%s0 + $0x280] sm:$0xff]
      %v499 = vld [vmem:[%s0 + $0x288] sm:$0xff]
      %v500 = vld [vmem:[%s0 + $0x290] sm:$0xff]
      %v501 = vld [vmem:[%s0 + $0x298] sm:$0xff]
      %v502 = vld [vmem:[%s0 + $0x2a0] sm:$0xff]
      %v503 = vld [vmem:[%s0 + $0x2a8] sm:$0xff]
      %v504 = vld [vmem:[%s0 + $0x2b0] sm:$0xff]
      %v505 = vld [vmem:[%s0 + $0x2b8] sm:$0xff]
      %v506 = vld [vmem:[%s0 + $0x2c0] sm:$0xff]
      %v507 = vld [vmem:[%s0 + $0x2c8] sm:$0xff]
      %v508 = vld [vmem:[%s0 + $0x2d0] sm:$0xff]
      %v509 = vld [vmem:[%s0 + $0x2d8] sm:$0xff]
      %v510 = vld [vmem:[%s0 + $0x2e0] sm:$0xff]
      %v511 = vld [vmem:[%s0 + $0x2e8] sm:$0xff]
      %v512 = vld [vmem:[%s0 + $0x2f0] sm:$0xff]
      %v513 = vld [vmem:[%s0 + $0x2f8] sm:$0xff]
      %v514 = vld [vmem:[%s0 + $0x300] sm:$0xff]
      %v515 = vld [vmem:[%s0 + $0x308] sm:$0xff]
      %v516 = vld [vmem:[%s0 + $0x310] sm:$0xff]
      %v517 = vld [vmem:[%s0 + $0x318] sm:$0xff]
      %v518 = vld [vmem:[%s0 + $0x320] sm:$0xff]
      %v519 = vld [vmem:[%s0 + $0x328] sm:$0xff]
      %v520 = vld [vmem:[%s0 + $0x330] sm:$0xff]
      %v521 = vld [vmem:[%s0 + $0x338] sm:$0xff]
      %v522 = vld [vmem:[%s0 + $0x340] sm:$0xff]
      %v523 = vld [vmem:[%s0 + $0x348] sm:$0xff]
      %v524 = vld [vmem:[%s0 + $0x350] sm:$0xff]
      %v525 = vld [vmem:[%s0 + $0x358] sm:$0xff]
      %527 = vset.pattern.permute.xlu0 0
      %528 = vperm.xlu0 %527, %v256
      %v529 = vpop.permute.xlu0 %528
      %532 = vset.pattern.permute.xlu0 0
      %533 = vperm.xlu0 %532, %v257
      %v534 = vpop.permute.xlu0 %533
      %537 = vset.pattern.permute.xlu0 0
      %538 = vperm.xlu0 %537, %v258
      %v539 = vpop.permute.xlu0 %538
      %542 = vset.pattern.permute.xlu0 0
      %543 = vperm.xlu0 %542, %v259
      %v544 = vpop.permute.xlu0 %543
      %547 = vset.pattern.permute.xlu0 0
      %548 = vperm.xlu0 %547, %v260
      %v549 = vpop.permute.xlu0 %548
      %552 = vset.pattern.permute.xlu0 0
      %553 = vperm.xlu0 %552, %v261
      %v554 = vpop.permute.xlu0 %553
      %557 = vset.pattern.permute.xlu0 0
      %558 = vperm.xlu0 %557, %v262
      %v559 = vpop.permute.xlu0 %558
      %562 = vset.pattern.permute.xlu0 0
      %563 = vperm.xlu0 %562, %v263
      %v564 = vpop.permute.xlu0 %563
      %567 = vset.pattern.permute.xlu0 0
      %568 = vperm.xlu0 %567, %v264
      %v569 = vpop.permute.xlu0 %568
      %572 = vset.pattern.permute.xlu0 0
      %573 = vperm.xlu0 %572, %v265
      %v574 = vpop.permute.xlu0 %573
      %577 = vset.pattern.permute.xlu0 0
      %578 = vperm.xlu0 %577, %v266
      %v579 = vpop.permute.xlu0 %578
      %582 = vset.pattern.permute.xlu0 0
      %583 = vperm.xlu0 %582, %v267
      %v584 = vpop.permute.xlu0 %583
      %587 = vset.pattern.permute.xlu0 0
      %588 = vperm.xlu0 %587, %v268
      %v589 = vpop.permute.xlu0 %588
      %592 = vset.pattern.permute.xlu0 0
      %593 = vperm.xlu0 %592, %v269
      %v594 = vpop.permute.xlu0 %593
      %597 = vset.pattern.permute.xlu0 0
      %598 = vperm.xlu0 %597, %v270
      %v599 = vpop.permute.xlu0 %598
      %602 = vset.pattern.permute.xlu0 0
      %603 = vperm.xlu0 %602, %v271
      %v604 = vpop.permute.xlu0 %603
      %607 = vset.pattern.permute.xlu0 0
      %608 = vperm.xlu0 %607, %v272
      %v609 = vpop.permute.xlu0 %608
      %612 = vset.pattern.permute.xlu0 0
      %613 = vperm.xlu0 %612, %v273
      %v614 = vpop.permute.xlu0 %613
      %617 = vset.pattern.permute.xlu0 0
      %618 = vperm.xlu0 %617, %v274
      %v619 = vpop.permute.xlu0 %618
      %622 = vset.pattern.permute.xlu0 0
      %623 = vperm.xlu0 %622, %v275
      %v624 = vpop.permute.xlu0 %623
      %627 = vset.pattern.permute.xlu0 0
      %628 = vperm.xlu0 %627, %v276
      %v629 = vpop.permute.xlu0 %628
      %632 = vset.pattern.permute.xlu0 0
      %633 = vperm.xlu0 %632, %v277
      %v634 = vpop.permute.xlu0 %633
      %637 = vset.pattern.permute.xlu0 0
      %638 = vperm.xlu0 %637, %v278
      %v639 = vpop.permute.xlu0 %638
      %642 = vset.pattern.permute.xlu0 0
      %643 = vperm.xlu0 %642, %v279
      %v644 = vpop.permute.xlu0 %643
      %647 = vset.pattern.permute.xlu0 0
      %648 = vperm.xlu0 %647, %v280
      %v649 = vpop.permute.xlu0 %648
      %652 = vset.pattern.permute.xlu0 0
      %653 = vperm.xlu0 %652, %v281
      %v654 = vpop.permute.xlu0 %653
      %657 = vset.pattern.permute.xlu0 0
      %658 = vperm.xlu0 %657, %v282
      %v659 = vpop.permute.xlu0 %658
      %662 = vset.pattern.permute.xlu0 0
      %663 = vperm.xlu0 %662, %v283
      %v664 = vpop.permute.xlu0 %663
      %667 = vset.pattern.permute.xlu0 0
      %668 = vperm.xlu0 %667, %v284
      %v669 = vpop.permute.xlu0 %668
      %672 = vset.pattern.permute.xlu0 0
      %673 = vperm.xlu0 %672, %v285
      %v674 = vpop.permute.xlu0 %673
      %677 = vset.pattern.permute.xlu0 0
      %678 = vperm.xlu0 %677, %v286
      %v679 = vpop.permute.xlu0 %678
      %682 = vset.pattern.permute.xlu0 0
      %683 = vperm.xlu0 %682, %v287
      %v684 = vpop.permute.xlu0 %683
      %687 = vset.pattern.permute.xlu0 0
      %688 = vperm.xlu0 %687, %v288
      %v689 = vpop.permute.xlu0 %688
      %692 = vset.pattern.permute.xlu0 0
      %693 = vperm.xlu0 %692, %v289
      %v694 = vpop.permute.xlu0 %693
      %697 = vset.pattern.permute.xlu0 0
      %698 = vperm.xlu0 %697, %v290
      %v699 = vpop.permute.xlu0 %698
      %702 = vset.pattern.permute.xlu0 0
      %703 = vperm.xlu0 %702, %v291
      %v704 = vpop.permute.xlu0 %703
      %707 = vset.pattern.permute.xlu0 0
      %708 = vperm.xlu0 %707, %v292
      %v709 = vpop.permute.xlu0 %708
      %712 = vset.pattern.permute.xlu0 0
      %713 = vperm.xlu0 %712, %v293
      %v714 = vpop.permute.xlu0 %713
      %717 = vset.pattern.permute.xlu0 0
      %718 = vperm.xlu0 %717, %v294
      %v719 = vpop.permute.xlu0 %718
      %722 = vset.pattern.permute.xlu0 0
      %723 = vperm.xlu0 %722, %v295
      %v724 = vpop.permute.xlu0 %723
      %727 = vset.pattern.permute.xlu0 0
      %728 = vperm.xlu0 %727, %v296
      %v729 = vpop.permute.xlu0 %728
      %732 = vset.pattern.permute.xlu0 0
      %733 = vperm.xlu0 %732, %v297
      %v734 = vpop.permute.xlu0 %733
      %737 = vset.pattern.permute.xlu0 0
      %738 = vperm.xlu0 %737, %v298
      %v739 = vpop.permute.xlu0 %738
      %742 = vset.pattern.permute.xlu0 0
      %743 = vperm.xlu0 %742, %v299
      %v744 = vpop.permute.xlu0 %743
      %747 = vset.pattern.permute.xlu0 0
      %748 = vperm.xlu0 %747, %v300
      %v749 = vpop.permute.xlu0 %748
      %752 = vset.pattern.permute.xlu0 0
      %753 = vperm.xlu0 %752, %v301
      %v754 = vpop.permute.xlu0 %753
      %757 = vset.pattern.permute.xlu0 0
      %758 = vperm.xlu0 %757, %v302
      %v759 = vpop.permute.xlu0 %758
      %762 = vset.pattern.permute.xlu0 0
      %763 = vperm.xlu0 %762, %v303
      %v764 = vpop.permute.xlu0 %763
      %767 = vset.pattern.permute.xlu0 0
      %768 = vperm.xlu0 %767, %v304
      %v769 = vpop.permute.xlu0 %768
      %772 = vset.pattern.permute.xlu0 0
      %773 = vperm.xlu0 %772, %v305
      %v774 = vpop.permute.xlu0 %773
      %777 = vset.pattern.permute.xlu0 0
      %778 = vperm.xlu0 %777, %v306
      %v779 = vpop.permute.xlu0 %778
      %782 = vset.pattern.permute.xlu0 0
      %783 = vperm.xlu0 %782, %v307
      %v784 = vpop.permute.xlu0 %783
      %787 = vset.pattern.permute.xlu0 0
      %788 = vperm.xlu0 %787, %v308
      %v789 = vpop.permute.xlu0 %788
      %792 = vset.pattern.permute.xlu0 0
      %793 = vperm.xlu0 %792, %v309
      %v794 = vpop.permute.xlu0 %793
      %v796 = vmul.f32 %v418, %v529
      %v797 = vmul.f32 %v419, %v529
      %v798 = vmul.f32 %v420, %v534
      %v799 = vmul.f32 %v421, %v534
      %v800 = vmul.f32 %v422, %v539
      %v801 = vmul.f32 %v423, %v539
      %v802 = vmul.f32 %v424, %v544
      %v803 = vmul.f32 %v425, %v544
      %v804 = vmul.f32 %v426, %v549
      %v805 = vmul.f32 %v427, %v549
      %v806 = vmul.f32 %v428, %v554
      %v807 = vmul.f32 %v429, %v554
      %v808 = vmul.f32 %v430, %v559
      %v809 = vmul.f32 %v431, %v559
      %v810 = vmul.f32 %v432, %v564
      %v811 = vmul.f32 %v433, %v564
      %v812 = vmul.f32 %v434, %v569
      %v813 = vmul.f32 %v435, %v569
      %v814 = vmul.f32 %v436, %v574
      %v815 = vmul.f32 %v437, %v574
      %v816 = vmul.f32 %v438, %v579
      %v817 = vmul.f32 %v439, %v579
      %v818 = vmul.f32 %v440, %v584
      %v819 = vmul.f32 %v441, %v584
      %v820 = vmul.f32 %v442, %v589
      %v821 = vmul.f32 %v443, %v589
      %v822 = vmul.f32 %v444, %v594
      %v823 = vmul.f32 %v445, %v594
      %v824 = vmul.f32 %v446, %v599
      %v825 = vmul.f32 %v447, %v599
      %v826 = vmul.f32 %v448, %v604
      %v827 = vmul.f32 %v449, %v604
      %v828 = vmul.f32 %v450, %v609
      %v829 = vmul.f32 %v451, %v609
      %v830 = vmul.f32 %v452, %v614
      %v831 = vmul.f32 %v453, %v614
      %v832 = vmul.f32 %v454, %v619
      %v833 = vmul.f32 %v455, %v619
      %v834 = vmul.f32 %v456, %v624
      %v835 = vmul.f32 %v457, %v624
      %v836 = vmul.f32 %v458, %v629
      %v837 = vmul.f32 %v459, %v629
      %v838 = vmul.f32 %v460, %v634
      %v839 = vmul.f32 %v461, %v634
      %v840 = vmul.f32 %v462, %v639
      %v841 = vmul.f32 %v463, %v639
      %v842 = vmul.f32 %v464, %v644
      %v843 = vmul.f32 %v465, %v644
      %v844 = vmul.f32 %v466, %v649
      %v845 = vmul.f32 %v467, %v649
      %v846 = vmul.f32 %v468, %v654
      %v847 = vmul.f32 %v469, %v654
      %v848 = vmul.f32 %v470, %v659
      %v849 = vmul.f32 %v471, %v659
      %v850 = vmul.f32 %v472, %v664
      %v851 = vmul.f32 %v473, %v664
      %v852 = vmul.f32 %v474, %v669
      %v853 = vmul.f32 %v475, %v669
      %v854 = vmul.f32 %v476, %v674
      %v855 = vmul.f32 %v477, %v674
      %v856 = vmul.f32 %v478, %v679
      %v857 = vmul.f32 %v479, %v679
      %v858 = vmul.f32 %v480, %v684
      %v859 = vmul.f32 %v481, %v684
      %v860 = vmul.f32 %v482, %v689
      %v861 = vmul.f32 %v483, %v689
      %v862 = vmul.f32 %v484, %v694
      %v863 = vmul.f32 %v485, %v694
      %v864 = vmul.f32 %v486, %v699
      %v865 = vmul.f32 %v487, %v699
      %v866 = vmul.f32 %v488, %v704
      %v867 = vmul.f32 %v489, %v704
      %v868 = vmul.f32 %v490, %v709
      %v869 = vmul.f32 %v491, %v709
      %v870 = vmul.f32 %v492, %v714
      %v871 = vmul.f32 %v493, %v714
      %v872 = vmul.f32 %v494, %v719
      %v873 = vmul.f32 %v495, %v719
      %v874 = vmul.f32 %v496, %v724
      %v875 = vmul.f32 %v497, %v724
      %v876 = vmul.f32 %v498, %v729
      %v877 = vmul.f32 %v499, %v729
      %v878 = vmul.f32 %v500, %v734
      %v879 = vmul.f32 %v501, %v734
      %v880 = vmul.f32 %v502, %v739
      %v881 = vmul.f32 %v503, %v739
      %v882 = vmul.f32 %v504, %v744
      %v883 = vmul.f32 %v505, %v744
      %v884 = vmul.f32 %v506, %v749
      %v885 = vmul.f32 %v507, %v749
      %v886 = vmul.f32 %v508, %v754
      %v887 = vmul.f32 %v509, %v754
      %v888 = vmul.f32 %v510, %v759
      %v889 = vmul.f32 %v511, %v759
      %v890 = vmul.f32 %v512, %v764
      %v891 = vmul.f32 %v513, %v764
      %v892 = vmul.f32 %v514, %v769
      %v893 = vmul.f32 %v515, %v769
      %v894 = vmul.f32 %v516, %v774
      %v895 = vmul.f32 %v517, %v774
      %v896 = vmul.f32 %v518, %v779
      %v897 = vmul.f32 %v519, %v779
      %v898 = vmul.f32 %v520, %v784
      %v899 = vmul.f32 %v521, %v784
      %v900 = vmul.f32 %v522, %v789
      %v901 = vmul.f32 %v523, %v789
      %v902 = vmul.f32 %v524, %v794
      %v903 = vmul.f32 %v525, %v794
      %v904 = vadd.f32 %v310, %v796
      %v905 = vadd.f32 %v311, %v797
      %v906 = vadd.f32 %v312, %v798
      %v907 = vadd.f32 %v313, %v799
      %v908 = vadd.f32 %v314, %v800
      %v909 = vadd.f32 %v315, %v801
      %v910 = vadd.f32 %v316, %v802
      %v911 = vadd.f32 %v317, %v803
      %v912 = vadd.f32 %v318, %v804
      %v913 = vadd.f32 %v319, %v805
      %v914 = vadd.f32 %v320, %v806
      %v915 = vadd.f32 %v321, %v807
      %v916 = vadd.f32 %v322, %v808
      %v917 = vadd.f32 %v323, %v809
      %v918 = vadd.f32 %v324, %v810
      %v919 = vadd.f32 %v325, %v811
      %v920 = vadd.f32 %v326, %v812
      %v921 = vadd.f32 %v327, %v813
      %v922 = vadd.f32 %v328, %v814
      %v923 = vadd.f32 %v329, %v815
      %v924 = vadd.f32 %v330, %v816
      %v925 = vadd.f32 %v331, %v817
      %v926 = vadd.f32 %v332, %v818
      %v927 = vadd.f32 %v333, %v819
      %v928 = vadd.f32 %v334, %v820
      %v929 = vadd.f32 %v335, %v821
      %v930 = vadd.f32 %v336, %v822
      %v931 = vadd.f32 %v337, %v823
      %v932 = vadd.f32 %v338, %v824
      %v933 = vadd.f32 %v339, %v825
      %v934 = vadd.f32 %v340, %v826
      %v935 = vadd.f32 %v341, %v827
      %v936 = vadd.f32 %v342, %v828
      %v937 = vadd.f32 %v343, %v829
      %v938 = vadd.f32 %v344, %v830
      %v939 = vadd.f32 %v345, %v831
      %v940 = vadd.f32 %v346, %v832
      %v941 = vadd.f32 %v347, %v833
      %v942 = vadd.f32 %v348, %v834
      %v943 = vadd.f32 %v349, %v835
      %v944 = vadd.f32 %v350, %v836
      %v945 = vadd.f32 %v351, %v837
      %v946 = vadd.f32 %v352, %v838
      %v947 = vadd.f32 %v353, %v839
      %v948 = vadd.f32 %v354, %v840
      %v949 = vadd.f32 %v355, %v841
      %v950 = vadd.f32 %v356, %v842
      %v951 = vadd.f32 %v357, %v843
      %v952 = vadd.f32 %v358, %v844
      %v953 = vadd.f32 %v359, %v845
      %v954 = vadd.f32 %v360, %v846
      %v955 = vadd.f32 %v361, %v847
      %v956 = vadd.f32 %v362, %v848
      %v957 = vadd.f32 %v363, %v849
      %v958 = vadd.f32 %v364, %v850
      %v959 = vadd.f32 %v365, %v851
      %v960 = vadd.f32 %v366, %v852
      %v961 = vadd.f32 %v367, %v853
      %v962 = vadd.f32 %v368, %v854
      %v963 = vadd.f32 %v369, %v855
      %v964 = vadd.f32 %v370, %v856
      %v965 = vadd.f32 %v371, %v857
      %v966 = vadd.f32 %v372, %v858
      %v967 = vadd.f32 %v373, %v859
      %v968 = vadd.f32 %v374, %v860
      %v969 = vadd.f32 %v375, %v861
      %v970 = vadd.f32 %v376, %v862
      %v971 = vadd.f32 %v377, %v863
      %v972 = vadd.f32 %v378, %v864
      %v973 = vadd.f32 %v379, %v865
      %v974 = vadd.f32 %v380, %v866
      %v975 = vadd.f32 %v381, %v867
      %v976 = vadd.f32 %v382, %v868
      %v977 = vadd.f32 %v383, %v869
      %v978 = vadd.f32 %v384, %v870
      %v979 = vadd.f32 %v385, %v871
      %v980 = vadd.f32 %v386, %v872
      %v981 = vadd.f32 %v387, %v873
      %v982 = vadd.f32 %v388, %v874
      %v983 = vadd.f32 %v389, %v875
      %v984 = vadd.f32 %v390, %v876
      %v985 = vadd.f32 %v391, %v877
      %v986 = vadd.f32 %v392, %v878
      %v987 = vadd.f32 %v393, %v879
      %v988 = vadd.f32 %v394, %v880
      %v989 = vadd.f32 %v395, %v881
      %v990 = vadd.f32 %v396, %v882
      %v991 = vadd.f32 %v397, %v883
      %v992 = vadd.f32 %v398, %v884
      %v993 = vadd.f32 %v399, %v885
      %v994 = vadd.f32 %v400, %v886
      %v995 = vadd.f32 %v401, %v887
      %v996 = vadd.f32 %v402, %v888
      %v997 = vadd.f32 %v403, %v889
      %v998 = vadd.f32 %v404, %v890
      %v999 = vadd.f32 %v405, %v891
      %v1000 = vadd.f32 %v406, %v892
      %v1001 = vadd.f32 %v407, %v893
      %v1002 = vadd.f32 %v408, %v894
      %v1003 = vadd.f32 %v409, %v895
      %v1004 = vadd.f32 %v410, %v896
      %v1005 = vadd.f32 %v411, %v897
      %v1006 = vadd.f32 %v412, %v898
      %v1007 = vadd.f32 %v413, %v899
      %v1008 = vadd.f32 %v414, %v900
      %v1009 = vadd.f32 %v415, %v901
      %v1010 = vadd.f32 %v416, %v902
      %v1011 = vadd.f32 %v417, %v903
      %1012 = vset.pattern.permute.xlu0 1
      %1013 = vperm.xlu0 %1012, %v256
      %v1014 = vpop.permute.xlu0 %1013
      %1016 = vset.pattern.permute.xlu0 1
      %1017 = vperm.xlu0 %1016, %v257
      %v1018 = vpop.permute.xlu0 %1017
      %1020 = vset.pattern.permute.xlu0 1
      %1021 = vperm.xlu0 %1020, %v258
      %v1022 = vpop.permute.xlu0 %1021
      %1024 = vset.pattern.permute.xlu0 1
      %1025 = vperm.xlu0 %1024, %v259
      %v1026 = vpop.permute.xlu0 %1025
      %1028 = vset.pattern.permute.xlu0 1
      %1029 = vperm.xlu0 %1028, %v260
      %v1030 = vpop.permute.xlu0 %1029
      %1032 = vset.pattern.permute.xlu0 1
      %1033 = vperm.xlu0 %1032, %v261
      %v1034 = vpop.permute.xlu0 %1033
      %1036 = vset.pattern.permute.xlu0 1
      %1037 = vperm.xlu0 %1036, %v262
      %v1038 = vpop.permute.xlu0 %1037
      %1040 = vset.pattern.permute.xlu0 1
      %1041 = vperm.xlu0 %1040, %v263
      %v1042 = vpop.permute.xlu0 %1041
      %1044 = vset.pattern.permute.xlu0 1
      %1045 = vperm.xlu0 %1044, %v264
      %v1046 = vpop.permute.xlu0 %1045
      %1048 = vset.pattern.permute.xlu0 1
      %1049 = vperm.xlu0 %1048, %v265
      %v1050 = vpop.permute.xlu0 %1049
      %1052 = vset.pattern.permute.xlu0 1
      %1053 = vperm.xlu0 %1052, %v266
      %v1054 = vpop.permute.xlu0 %1053
      %1056 = vset.pattern.permute.xlu0 1
      %1057 = vperm.xlu0 %1056, %v267
      %v1058 = vpop.permute.xlu0 %1057
      %1060 = vset.pattern.permute.xlu0 1
      %1061 = vperm.xlu0 %1060, %v268
      %v1062 = vpop.permute.xlu0 %1061
      %1064 = vset.pattern.permute.xlu0 1
      %1065 = vperm.xlu0 %1064, %v269
      %v1066 = vpop.permute.xlu0 %1065
      %1068 = vset.pattern.permute.xlu0 1
      %1069 = vperm.xlu0 %1068, %v270
      %v1070 = vpop.permute.xlu0 %1069
      %1072 = vset.pattern.permute.xlu0 1
      %1073 = vperm.xlu0 %1072, %v271
      %v1074 = vpop.permute.xlu0 %1073
      %1076 = vset.pattern.permute.xlu0 1
      %1077 = vperm.xlu0 %1076, %v272
      %v1078 = vpop.permute.xlu0 %1077
      %1080 = vset.pattern.permute.xlu0 1
      %1081 = vperm.xlu0 %1080, %v273
      %v1082 = vpop.permute.xlu0 %1081
      %1084 = vset.pattern.permute.xlu0 1
      %1085 = vperm.xlu0 %1084, %v274
      %v1086 = vpop.permute.xlu0 %1085
      %1088 = vset.pattern.permute.xlu0 1
      %1089 = vperm.xlu0 %1088, %v275
      %v1090 = vpop.permute.xlu0 %1089
      %1092 = vset.pattern.permute.xlu0 1
      %1093 = vperm.xlu0 %1092, %v276
      %v1094 = vpop.permute.xlu0 %1093
      %1096 = vset.pattern.permute.xlu0 1
      %1097 = vperm.xlu0 %1096, %v277
      %v1098 = vpop.permute.xlu0 %1097
      %1100 = vset.pattern.permute.xlu0 1
      %1101 = vperm.xlu0 %1100, %v278
      %v1102 = vpop.permute.xlu0 %1101
      %1104 = vset.pattern.permute.xlu0 1
      %1105 = vperm.xlu0 %1104, %v279
      %v1106 = vpop.permute.xlu0 %1105
      %1108 = vset.pattern.permute.xlu0 1
      %1109 = vperm.xlu0 %1108, %v280
      %v1110 = vpop.permute.xlu0 %1109
      %1112 = vset.pattern.permute.xlu0 1
      %1113 = vperm.xlu0 %1112, %v281
      %v1114 = vpop.permute.xlu0 %1113
      %1116 = vset.pattern.permute.xlu0 1
      %1117 = vperm.xlu0 %1116, %v282
      %v1118 = vpop.permute.xlu0 %1117
      %1120 = vset.pattern.permute.xlu0 1
      %1121 = vperm.xlu0 %1120, %v283
      %v1122 = vpop.permute.xlu0 %1121
      %1124 = vset.pattern.permute.xlu0 1
      %1125 = vperm.xlu0 %1124, %v284
      %v1126 = vpop.permute.xlu0 %1125
      %1128 = vset.pattern.permute.xlu0 1
      %1129 = vperm.xlu0 %1128, %v285
      %v1130 = vpop.permute.xlu0 %1129
      %1132 = vset.pattern.permute.xlu0 1
      %1133 = vperm.xlu0 %1132, %v286
      %v1134 = vpop.permute.xlu0 %1133
      %1136 = vset.pattern.permute.xlu0 1
      %1137 = vperm.xlu0 %1136, %v287
      %v1138 = vpop.permute.xlu0 %1137
      %1140 = vset.pattern.permute.xlu0 1
      %1141 = vperm.xlu0 %1140, %v288
      %v1142 = vpop.permute.xlu0 %1141
      %1144 = vset.pattern.permute.xlu0 1
      %1145 = vperm.xlu0 %1144, %v289
      %v1146 = vpop.permute.xlu0 %1145
      %1148 = vset.pattern.permute.xlu0 1
      %1149 = vperm.xlu0 %1148, %v290
      %v1150 = vpop.permute.xlu0 %1149
      %1152 = vset.pattern.permute.xlu0 1
      %1153 = vperm.xlu0 %1152, %v291
      %v1154 = vpop.permute.xlu0 %1153
      %1156 = vset.pattern.permute.xlu0 1
      %1157 = vperm.xlu0 %1156, %v292
      %v1158 = vpop.permute.xlu0 %1157
      %1160 = vset.pattern.permute.xlu0 1
      %1161 = vperm.xlu0 %1160, %v293
      %v1162 = vpop.permute.xlu0 %1161
      %1164 = vset.pattern.permute.xlu0 1
      %1165 = vperm.xlu0 %1164, %v294
      %v1166 = vpop.permute.xlu0 %1165
      %1168 = vset.pattern.permute.xlu0 1
      %1169 = vperm.xlu0 %1168, %v295
      %v1170 = vpop.permute.xlu0 %1169
      %1172 = vset.pattern.permute.xlu0 1
      %1173 = vperm.xlu0 %1172, %v296
      %v1174 = vpop.permute.xlu0 %1173
      %1176 = vset.pattern.permute.xlu0 1
      %1177 = vperm.xlu0 %1176, %v297
      %v1178 = vpop.permute.xlu0 %1177
      %1180 = vset.pattern.permute.xlu0 1
      %1181 = vperm.xlu0 %1180, %v298
      %v1182 = vpop.permute.xlu0 %1181
      %1184 = vset.pattern.permute.xlu0 1
      %1185 = vperm.xlu0 %1184, %v299
      %v1186 = vpop.permute.xlu0 %1185
      %1188 = vset.pattern.permute.xlu0 1
      %1189 = vperm.xlu0 %1188, %v300
      %v1190 = vpop.permute.xlu0 %1189
      %1192 = vset.pattern.permute.xlu0 1
      %1193 = vperm.xlu0 %1192, %v301
      %v1194 = vpop.permute.xlu0 %1193
      %1196 = vset.pattern.permute.xlu0 1
      %1197 = vperm.xlu0 %1196, %v302
      %v1198 = vpop.permute.xlu0 %1197
      %1200 = vset.pattern.permute.xlu0 1
      %1201 = vperm.xlu0 %1200, %v303
      %v1202 = vpop.permute.xlu0 %1201
      %1204 = vset.pattern.permute.xlu0 1
      %1205 = vperm.xlu0 %1204, %v304
      %v1206 = vpop.permute.xlu0 %1205
      %1208 = vset.pattern.permute.xlu0 1
      %1209 = vperm.xlu0 %1208, %v305
      %v1210 = vpop.permute.xlu0 %1209
      %1212 = vset.pattern.permute.xlu0 1
      %1213 = vperm.xlu0 %1212, %v306
      %v1214 = vpop.permute.xlu0 %1213
      %1216 = vset.pattern.permute.xlu0 1
      %1217 = vperm.xlu0 %1216, %v307
      %v1218 = vpop.permute.xlu0 %1217
      %1220 = vset.pattern.permute.xlu0 1
      %1221 = vperm.xlu0 %1220, %v308
      %v1222 = vpop.permute.xlu0 %1221
      %1224 = vset.pattern.permute.xlu0 1
      %1225 = vperm.xlu0 %1224, %v309
      %v1226 = vpop.permute.xlu0 %1225
      %v1228 = vadd.f32 %v904, %v1014
      %v1229 = vadd.f32 %v905, %v1014
      %v1230 = vadd.f32 %v906, %v1018
      %v1231 = vadd.f32 %v907, %v1018
      %v1232 = vadd.f32 %v908, %v1022
      %v1233 = vadd.f32 %v909, %v1022
      %v1234 = vadd.f32 %v910, %v1026
      %v1235 = vadd.f32 %v911, %v1026
      %v1236 = vadd.f32 %v912, %v1030
      %v1237 = vadd.f32 %v913, %v1030
      %v1238 = vadd.f32 %v914, %v1034
      %v1239 = vadd.f32 %v915, %v1034
      %v1240 = vadd.f32 %v916, %v1038
      %v1241 = vadd.f32 %v917, %v1038
      %v1242 = vadd.f32 %v918, %v1042
      %v1243 = vadd.f32 %v919, %v1042
      %v1244 = vadd.f32 %v920, %v1046
      %v1245 = vadd.f32 %v921, %v1046
      %v1246 = vadd.f32 %v922, %v1050
      %v1247 = vadd.f32 %v923, %v1050
      %v1248 = vadd.f32 %v924, %v1054
      %v1249 = vadd.f32 %v925, %v1054
      %v1250 = vadd.f32 %v926, %v1058
      %v1251 = vadd.f32 %v927, %v1058
      %v1252 = vadd.f32 %v928, %v1062
      %v1253 = vadd.f32 %v929, %v1062
      %v1254 = vadd.f32 %v930, %v1066
      %v1255 = vadd.f32 %v931, %v1066
      %v1256 = vadd.f32 %v932, %v1070
      %v1257 = vadd.f32 %v933, %v1070
      %v1258 = vadd.f32 %v934, %v1074
      %v1259 = vadd.f32 %v935, %v1074
      %v1260 = vadd.f32 %v936, %v1078
      %v1261 = vadd.f32 %v937, %v1078
      %v1262 = vadd.f32 %v938, %v1082
      %v1263 = vadd.f32 %v939, %v1082
      %v1264 = vadd.f32 %v940, %v1086
      %v1265 = vadd.f32 %v941, %v1086
      %v1266 = vadd.f32 %v942, %v1090
      %v1267 = vadd.f32 %v943, %v1090
      %v1268 = vadd.f32 %v944, %v1094
      %v1269 = vadd.f32 %v945, %v1094
      %v1270 = vadd.f32 %v946, %v1098
      %v1271 = vadd.f32 %v947, %v1098
      %v1272 = vadd.f32 %v948, %v1102
      %v1273 = vadd.f32 %v949, %v1102
      %v1274 = vadd.f32 %v950, %v1106
      %v1275 = vadd.f32 %v951, %v1106
      %v1276 = vadd.f32 %v952, %v1110
      %v1277 = vadd.f32 %v953, %v1110
      %v1278 = vadd.f32 %v954, %v1114
      %v1279 = vadd.f32 %v955, %v1114
      %v1280 = vadd.f32 %v956, %v1118
      %v1281 = vadd.f32 %v957, %v1118
      %v1282 = vadd.f32 %v958, %v1122
      %v1283 = vadd.f32 %v959, %v1122
      %v1284 = vadd.f32 %v960, %v1126
      %v1285 = vadd.f32 %v961, %v1126
      %v1286 = vadd.f32 %v962, %v1130
      %v1287 = vadd.f32 %v963, %v1130
      %v1288 = vadd.f32 %v964, %v1134
      %v1289 = vadd.f32 %v965, %v1134
      %v1290 = vadd.f32 %v966, %v1138
      %v1291 = vadd.f32 %v967, %v1138
      %v1292 = vadd.f32 %v968, %v1142
      %v1293 = vadd.f32 %v969, %v1142
      %v1294 = vadd.f32 %v970, %v1146
      %v1295 = vadd.f32 %v971, %v1146
      %v1296 = vadd.f32 %v972, %v1150
      %v1297 = vadd.f32 %v973, %v1150
      %v1298 = vadd.f32 %v974, %v1154
      %v1299 = vadd.f32 %v975, %v1154
      %v1300 = vadd.f32 %v976, %v1158
      %v1301 = vadd.f32 %v977, %v1158
      %v1302 = vadd.f32 %v978, %v1162
      %v1303 = vadd.f32 %v979, %v1162
      %v1304 = vadd.f32 %v980, %v1166
      %v1305 = vadd.f32 %v981, %v1166
      %v1306 = vadd.f32 %v982, %v1170
      %v1307 = vadd.f32 %v983, %v1170
      %v1308 = vadd.f32 %v984, %v1174
      %v1309 = vadd.f32 %v985, %v1174
      %v1310 = vadd.f32 %v986, %v1178
      %v1311 = vadd.f32 %v987, %v1178
      %v1312 = vadd.f32 %v988, %v1182
      %v1313 = vadd.f32 %v989, %v1182
      %v1314 = vadd.f32 %v990, %v1186
      %v1315 = vadd.f32 %v991, %v1186
      %v1316 = vadd.f32 %v992, %v1190
      %v1317 = vadd.f32 %v993, %v1190
      %v1318 = vadd.f32 %v994, %v1194
      %v1319 = vadd.f32 %v995, %v1194
      %v1320 = vadd.f32 %v996, %v1198
      %v1321 = vadd.f32 %v997, %v1198
      %v1322 = vadd.f32 %v998, %v1202
      %v1323 = vadd.f32 %v999, %v1202
      %v1324 = vadd.f32 %v1000, %v1206
      %v1325 = vadd.f32 %v1001, %v1206
      %v1326 = vadd.f32 %v1002, %v1210
      %v1327 = vadd.f32 %v1003, %v1210
      %v1328 = vadd.f32 %v1004, %v1214
      %v1329 = vadd.f32 %v1005, %v1214
      %v1330 = vadd.f32 %v1006, %v1218
      %v1331 = vadd.f32 %v1007, %v1218
      %v1332 = vadd.f32 %v1008, %v1222
      %v1333 = vadd.f32 %v1009, %v1222
      %v1334 = vadd.f32 %v1010, %v1226
      %v1335 = vadd.f32 %v1011, %v1226
      %v1336 = vmax.f32 %v1228, 0.0
      %v1337 = vmax.f32 %v1229, 0.0
      %v1338 = vmax.f32 %v1230, 0.0
      %v1339 = vmax.f32 %v1231, 0.0
      %v1340 = vmax.f32 %v1232, 0.0
      %v1341 = vmax.f32 %v1233, 0.0
      %v1342 = vmax.f32 %v1234, 0.0
      %v1343 = vmax.f32 %v1235, 0.0
      %v1344 = vmax.f32 %v1236, 0.0
      %v1345 = vmax.f32 %v1237, 0.0
      %v1346 = vmax.f32 %v1238, 0.0
      %v1347 = vmax.f32 %v1239, 0.0
      %v1348 = vmax.f32 %v1240, 0.0
      %v1349 = vmax.f32 %v1241, 0.0
      %v1350 = vmax.f32 %v1242, 0.0
      %v1351 = vmax.f32 %v1243, 0.0
      %v1352 = vmax.f32 %v1244, 0.0
      %v1353 = vmax.f32 %v1245, 0.0
      %v1354 = vmax.f32 %v1246, 0.0
      %v1355 = vmax.f32 %v1247, 0.0
      %v1356 = vmax.f32 %v1248, 0.0
      %v1357 = vmax.f32 %v1249, 0.0
      %v1358 = vmax.f32 %v1250, 0.0
      %v1359 = vmax.f32 %v1251, 0.0
      %v1360 = vmax.f32 %v1252, 0.0
      %v1361 = vmax.f32 %v1253, 0.0
      %v1362 = vmax.f32 %v1254, 0.0
      %v1363 = vmax.f32 %v1255, 0.0
      %v1364 = vmax.f32 %v1256, 0.0
      %v1365 = vmax.f32 %v1257, 0.0
      %v1366 = vmax.f32 %v1258, 0.0
      %v1367 = vmax.f32 %v1259, 0.0
      %v1368 = vmax.f32 %v1260, 0.0
      %v1369 = vmax.f32 %v1261, 0.0
      %v1370 = vmax.f32 %v1262, 0.0
      %v1371 = vmax.f32 %v1263, 0.0
      %v1372 = vmax.f32 %v1264, 0.0
      %v1373 = vmax.f32 %v1265, 0.0
      %v1374 = vmax.f32 %v1266, 0.0
      %v1375 = vmax.f32 %v1267, 0.0
      %v1376 = vmax.f32 %v1268, 0.0
      %v1377 = vmax.f32 %v1269, 0.0
      %v1378 = vmax.f32 %v1270, 0.0
      %v1379 = vmax.f32 %v1271, 0.0
      %v1380 = vmax.f32 %v1272, 0.0
      %v1381 = vmax.f32 %v1273, 0.0
      %v1382 = vmax.f32 %v1274, 0.0
      %v1383 = vmax.f32 %v1275, 0.0
      %v1384 = vmax.f32 %v1276, 0.0
      %v1385 = vmax.f32 %v1277, 0.0
      %v1386 = vmax.f32 %v1278, 0.0
      %v1387 = vmax.f32 %v1279, 0.0
      %v1388 = vmax.f32 %v1280, 0.0
      %v1389 = vmax.f32 %v1281, 0.0
      %v1390 = vmax.f32 %v1282, 0.0
      %v1391 = vmax.f32 %v1283, 0.0
      %v1392 = vmax.f32 %v1284, 0.0
      %v1393 = vmax.f32 %v1285, 0.0
      %v1394 = vmax.f32 %v1286, 0.0
      %v1395 = vmax.f32 %v1287, 0.0
      %v1396 = vmax.f32 %v1288, 0.0
      %v1397 = vmax.f32 %v1289, 0.0
      %v1398 = vmax.f32 %v1290, 0.0
      %v1399 = vmax.f32 %v1291, 0.0
      %v1400 = vmax.f32 %v1292, 0.0
      %v1401 = vmax.f32 %v1293, 0.0
      %v1402 = vmax.f32 %v1294, 0.0
      %v1403 = vmax.f32 %v1295, 0.0
      %v1404 = vmax.f32 %v1296, 0.0
      %v1405 = vmax.f32 %v1297, 0.0
      %v1406 = vmax.f32 %v1298, 0.0
      %v1407 = vmax.f32 %v1299, 0.0
      %v1408 = vmax.f32 %v1300, 0.0
      %v1409 = vmax.f32 %v1301, 0.0
      %v1410 = vmax.f32 %v1302, 0.0
      %v1411 = vmax.f32 %v1303, 0.0
      %v1412 = vmax.f32 %v1304, 0.0
      %v1413 = vmax.f32 %v1305, 0.0
      %v1414 = vmax.f32 %v1306, 0.0
      %v1415 = vmax.f32 %v1307, 0.0
      %v1416 = vmax.f32 %v1308, 0.0
      %v1417 = vmax.f32 %v1309, 0.0
      %v1418 = vmax.f32 %v1310, 0.0
      %v1419 = vmax.f32 %v1311, 0.0
      %v1420 = vmax.f32 %v1312, 0.0
      %v1421 = vmax.f32 %v1313, 0.0
      %v1422 = vmax.f32 %v1314, 0.0
      %v1423 = vmax.f32 %v1315, 0.0
      %v1424 = vmax.f32 %v1316, 0.0
      %v1425 = vmax.f32 %v1317, 0.0
      %v1426 = vmax.f32 %v1318, 0.0
      %v1427 = vmax.f32 %v1319, 0.0
      %v1428 = vmax.f32 %v1320, 0.0
      %v1429 = vmax.f32 %v1321, 0.0
      %v1430 = vmax.f32 %v1322, 0.0
      %v1431 = vmax.f32 %v1323, 0.0
      %v1432 = vmax.f32 %v1324, 0.0
      %v1433 = vmax.f32 %v1325, 0.0
      %v1434 = vmax.f32 %v1326, 0.0
      %v1435 = vmax.f32 %v1327, 0.0
      %v1436 = vmax.f32 %v1328, 0.0
      %v1437 = vmax.f32 %v1329, 0.0
      %v1438 = vmax.f32 %v1330, 0.0
      %v1439 = vmax.f32 %v1331, 0.0
      %v1440 = vmax.f32 %v1332, 0.0
      %v1441 = vmax.f32 %v1333, 0.0
      %v1442 = vmax.f32 %v1334, 0.0
      %v1443 = vmax.f32 %v1335, 0.0
      %v1444 = vpack.c.bf16 %v1338, %v1336
      %v1445 = vpack.c.bf16 %v1339, %v1337
      %v1446 = vpack.c.bf16 %v1342, %v1340
      %v1447 = vpack.c.bf16 %v1343, %v1341
      %v1448 = vpack.c.bf16 %v1346, %v1344
      %v1449 = vpack.c.bf16 %v1347, %v1345
      %v1450 = vpack.c.bf16 %v1350, %v1348
      %v1451 = vpack.c.bf16 %v1351, %v1349
      %v1452 = vpack.c.bf16 %v1354, %v1352
      %v1453 = vpack.c.bf16 %v1355, %v1353
      %v1454 = vpack.c.bf16 %v1358, %v1356
      %v1455 = vpack.c.bf16 %v1359, %v1357
      %v1456 = vpack.c.bf16 %v1362, %v1360
      %v1457 = vpack.c.bf16 %v1363, %v1361
      %v1458 = vpack.c.bf16 %v1366, %v1364
      %v1459 = vpack.c.bf16 %v1367, %v1365
      %v1460 = vpack.c.bf16 %v1370, %v1368
      %v1461 = vpack.c.bf16 %v1371, %v1369
      %v1462 = vpack.c.bf16 %v1374, %v1372
      %v1463 = vpack.c.bf16 %v1375, %v1373
      %v1464 = vpack.c.bf16 %v1378, %v1376
      %v1465 = vpack.c.bf16 %v1379, %v1377
      %v1466 = vpack.c.bf16 %v1382, %v1380
      %v1467 = vpack.c.bf16 %v1383, %v1381
      %v1468 = vpack.c.bf16 %v1386, %v1384
      %v1469 = vpack.c.bf16 %v1387, %v1385
      %v1470 = vpack.c.bf16 %v1390, %v1388
      %v1471 = vpack.c.bf16 %v1391, %v1389
      %v1472 = vpack.c.bf16 %v1394, %v1392
      %v1473 = vpack.c.bf16 %v1395, %v1393
      %v1474 = vpack.c.bf16 %v1398, %v1396
      %v1475 = vpack.c.bf16 %v1399, %v1397
      %v1476 = vpack.c.bf16 %v1402, %v1400
      %v1477 = vpack.c.bf16 %v1403, %v1401
      %v1478 = vpack.c.bf16 %v1406, %v1404
      %v1479 = vpack.c.bf16 %v1407, %v1405
      %v1480 = vpack.c.bf16 %v1410, %v1408
      %v1481 = vpack.c.bf16 %v1411, %v1409
      %v1482 = vpack.c.bf16 %v1414, %v1412
      %v1483 = vpack.c.bf16 %v1415, %v1413
      %v1484 = vpack.c.bf16 %v1418, %v1416
      %v1485 = vpack.c.bf16 %v1419, %v1417
      %v1486 = vpack.c.bf16 %v1422, %v1420
      %v1487 = vpack.c.bf16 %v1423, %v1421
      %v1488 = vpack.c.bf16 %v1426, %v1424
      %v1489 = vpack.c.bf16 %v1427, %v1425
      %v1490 = vpack.c.bf16 %v1430, %v1428
      %v1491 = vpack.c.bf16 %v1431, %v1429
      %v1492 = vpack.c.bf16 %v1434, %v1432
      %v1493 = vpack.c.bf16 %v1435, %v1433
      %v1494 = vpack.c.bf16 %v1438, %v1436
      %v1495 = vpack.c.bf16 %v1439, %v1437
      %v1496 = vpack.c.bf16 %v1442, %v1440
      %v1497 = vpack.c.bf16 %v1443, %v1441
      %v1498 = vld [vmem:[%s240] sm:$0xff]
      %v1499 = vld [vmem:[%s240 + $0x8] sm:$0xff]
      %v1500 = vld [vmem:[%s240 + $0x10] sm:$0xff]
      %v1501 = vld [vmem:[%s240 + $0x18] sm:$0xff]
      %v1502 = vld [vmem:[%s240 + $0x20] sm:$0xff]
      %v1503 = vld [vmem:[%s240 + $0x28] sm:$0xff]
      %v1504 = vld [vmem:[%s240 + $0x30] sm:$0xff]
      %v1505 = vld [vmem:[%s240 + $0x38] sm:$0xff]
      %v1506 = vld [vmem:[%s240 + $0x40] sm:$0xff]
      %v1507 = vld [vmem:[%s240 + $0x48] sm:$0xff]
      %v1508 = vld [vmem:[%s240 + $0x50] sm:$0xff]
      %v1509 = vld [vmem:[%s240 + $0x58] sm:$0xff]
      %v1510 = vld [vmem:[%s240 + $0x60] sm:$0xff]
      %v1511 = vld [vmem:[%s240 + $0x68] sm:$0xff]
      %v1512 = vld [vmem:[%s240 + $0x70] sm:$0xff]
      %v1513 = vld [vmem:[%s240 + $0x78] sm:$0xff]
      %v1514 = vld [vmem:[%s240 + $0x80] sm:$0xff]
      %v1515 = vld [vmem:[%s240 + $0x88] sm:$0xff]
      %v1516 = vld [vmem:[%s240 + $0x90] sm:$0xff]
      %v1517 = vld [vmem:[%s240 + $0x98] sm:$0xff]
      %v1518 = vld [vmem:[%s240 + $0xa0] sm:$0xff]
      %v1519 = vld [vmem:[%s240 + $0xa8] sm:$0xff]
      %v1520 = vld [vmem:[%s240 + $0xb0] sm:$0xff]
      %v1521 = vld [vmem:[%s240 + $0xb8] sm:$0xff]
      %v1522 = vld [vmem:[%s240 + $0xc0] sm:$0xff]
      %v1523 = vld [vmem:[%s240 + $0xc8] sm:$0xff]
      %v1524 = vld [vmem:[%s240 + $0xd0] sm:$0xff]
      %v1525 = vld [vmem:[%s240 + $0xd8] sm:$0xff]
      %v1526 = vld [vmem:[%s240 + $0xe0] sm:$0xff]
      %v1527 = vld [vmem:[%s240 + $0xe8] sm:$0xff]
      %v1528 = vld [vmem:[%s240 + $0xf0] sm:$0xff]
      %v1529 = vld [vmem:[%s240 + $0xf8] sm:$0xff]
      %v1530 = vld [vmem:[%s240 + $0x100] sm:$0xff]
      %v1531 = vld [vmem:[%s240 + $0x108] sm:$0xff]
      %v1532 = vld [vmem:[%s240 + $0x110] sm:$0xff]
      %v1533 = vld [vmem:[%s240 + $0x118] sm:$0xff]
      %v1534 = vld [vmem:[%s240 + $0x120] sm:$0xff]
      %v1535 = vld [vmem:[%s240 + $0x128] sm:$0xff]
      %v1536 = vld [vmem:[%s240 + $0x130] sm:$0xff]
      %v1537 = vld [vmem:[%s240 + $0x138] sm:$0xff]
      %v1538 = vld [vmem:[%s240 + $0x140] sm:$0xff]
      %v1539 = vld [vmem:[%s240 + $0x148] sm:$0xff]
      %v1540 = vld [vmem:[%s240 + $0x150] sm:$0xff]
      %v1541 = vld [vmem:[%s240 + $0x158] sm:$0xff]
      %v1542 = vld [vmem:[%s240 + $0x160] sm:$0xff]
      %v1543 = vld [vmem:[%s240 + $0x168] sm:$0xff]
      %v1544 = vld [vmem:[%s240 + $0x170] sm:$0xff]
      %v1545 = vld [vmem:[%s240 + $0x178] sm:$0xff]
      %v1546 = vld [vmem:[%s240 + $0x180] sm:$0xff]
      %v1547 = vld [vmem:[%s240 + $0x188] sm:$0xff]
      %v1548 = vld [vmem:[%s240 + $0x190] sm:$0xff]
      %v1549 = vld [vmem:[%s240 + $0x198] sm:$0xff]
      %v1550 = vld [vmem:[%s240 + $0x1a0] sm:$0xff]
      %v1551 = vld [vmem:[%s240 + $0x1a8] sm:$0xff]
      %v1552 = vld [vmem:[%s246] sm:$0xff]
      %v1553 = vld [vmem:[%s246 + $0x8] sm:$0xff]
      %v1554 = vld [vmem:[%s246 + $0x10] sm:$0xff]
      %v1555 = vld [vmem:[%s246 + $0x18] sm:$0xff]
      %v1556 = vld [vmem:[%s246 + $0x20] sm:$0xff]
      %v1557 = vld [vmem:[%s246 + $0x28] sm:$0xff]
      %v1558 = vld [vmem:[%s246 + $0x30] sm:$0xff]
      %v1559 = vld [vmem:[%s246 + $0x38] sm:$0xff]
      %v1560 = vld [vmem:[%s246 + $0x40] sm:$0xff]
      %v1561 = vld [vmem:[%s246 + $0x48] sm:$0xff]
      %v1562 = vld [vmem:[%s246 + $0x50] sm:$0xff]
      %v1563 = vld [vmem:[%s246 + $0x58] sm:$0xff]
      %v1564 = vld [vmem:[%s246 + $0x60] sm:$0xff]
      %v1565 = vld [vmem:[%s246 + $0x68] sm:$0xff]
      %v1566 = vld [vmem:[%s246 + $0x70] sm:$0xff]
      %v1567 = vld [vmem:[%s246 + $0x78] sm:$0xff]
      %v1568 = vld [vmem:[%s246 + $0x80] sm:$0xff]
      %v1569 = vld [vmem:[%s246 + $0x88] sm:$0xff]
      %v1570 = vld [vmem:[%s246 + $0x90] sm:$0xff]
      %v1571 = vld [vmem:[%s246 + $0x98] sm:$0xff]
      %v1572 = vld [vmem:[%s246 + $0xa0] sm:$0xff]
      %v1573 = vld [vmem:[%s246 + $0xa8] sm:$0xff]
      %v1574 = vld [vmem:[%s246 + $0xb0] sm:$0xff]
      %v1575 = vld [vmem:[%s246 + $0xb8] sm:$0xff]
      %v1576 = vld [vmem:[%s246 + $0xc0] sm:$0xff]
      %v1577 = vld [vmem:[%s246 + $0xc8] sm:$0xff]
      %v1578 = vld [vmem:[%s246 + $0xd0] sm:$0xff]
      %1580 = vset.pattern.permute.xlu0 0
      %1581 = vperm.xlu0 %1580, %v1552
      %v1582 = vpop.permute.xlu0 %1581
      %1585 = vset.pattern.permute.xlu0 0
      %1586 = vperm.xlu0 %1585, %v1553
      %v1587 = vpop.permute.xlu0 %1586
      %1590 = vset.pattern.permute.xlu0 0
      %1591 = vperm.xlu0 %1590, %v1554
      %v1592 = vpop.permute.xlu0 %1591
      %1595 = vset.pattern.permute.xlu0 0
      %1596 = vperm.xlu0 %1595, %v1555
      %v1597 = vpop.permute.xlu0 %1596
      %1600 = vset.pattern.permute.xlu0 0
      %1601 = vperm.xlu0 %1600, %v1556
      %v1602 = vpop.permute.xlu0 %1601
      %1605 = vset.pattern.permute.xlu0 0
      %1606 = vperm.xlu0 %1605, %v1557
      %v1607 = vpop.permute.xlu0 %1606
      %1610 = vset.pattern.permute.xlu0 0
      %1611 = vperm.xlu0 %1610, %v1558
      %v1612 = vpop.permute.xlu0 %1611
      %1615 = vset.pattern.permute.xlu0 0
      %1616 = vperm.xlu0 %1615, %v1559
      %v1617 = vpop.permute.xlu0 %1616
      %1620 = vset.pattern.permute.xlu0 0
      %1621 = vperm.xlu0 %1620, %v1560
      %v1622 = vpop.permute.xlu0 %1621
      %1625 = vset.pattern.permute.xlu0 0
      %1626 = vperm.xlu0 %1625, %v1561
      %v1627 = vpop.permute.xlu0 %1626
      %1630 = vset.pattern.permute.xlu0 0
      %1631 = vperm.xlu0 %1630, %v1562
      %v1632 = vpop.permute.xlu0 %1631
      %1635 = vset.pattern.permute.xlu0 0
      %1636 = vperm.xlu0 %1635, %v1563
      %v1637 = vpop.permute.xlu0 %1636
      %1640 = vset.pattern.permute.xlu0 0
      %1641 = vperm.xlu0 %1640, %v1564
      %v1642 = vpop.permute.xlu0 %1641
      %1645 = vset.pattern.permute.xlu0 0
      %1646 = vperm.xlu0 %1645, %v1565
      %v1647 = vpop.permute.xlu0 %1646
      %1650 = vset.pattern.permute.xlu0 0
      %1651 = vperm.xlu0 %1650, %v1566
      %v1652 = vpop.permute.xlu0 %1651
      %1655 = vset.pattern.permute.xlu0 0
      %1656 = vperm.xlu0 %1655, %v1567
      %v1657 = vpop.permute.xlu0 %1656
      %1660 = vset.pattern.permute.xlu0 0
      %1661 = vperm.xlu0 %1660, %v1568
      %v1662 = vpop.permute.xlu0 %1661
      %1665 = vset.pattern.permute.xlu0 0
      %1666 = vperm.xlu0 %1665, %v1569
      %v1667 = vpop.permute.xlu0 %1666
      %1670 = vset.pattern.permute.xlu0 0
      %1671 = vperm.xlu0 %1670, %v1570
      %v1672 = vpop.permute.xlu0 %1671
      %1675 = vset.pattern.permute.xlu0 0
      %1676 = vperm.xlu0 %1675, %v1571
      %v1677 = vpop.permute.xlu0 %1676
      %1680 = vset.pattern.permute.xlu0 0
      %1681 = vperm.xlu0 %1680, %v1572
      %v1682 = vpop.permute.xlu0 %1681
      %1685 = vset.pattern.permute.xlu0 0
      %1686 = vperm.xlu0 %1685, %v1573
      %v1687 = vpop.permute.xlu0 %1686
      %1690 = vset.pattern.permute.xlu0 0
      %1691 = vperm.xlu0 %1690, %v1574
      %v1692 = vpop.permute.xlu0 %1691
      %1695 = vset.pattern.permute.xlu0 0
      %1696 = vperm.xlu0 %1695, %v1575
      %v1697 = vpop.permute.xlu0 %1696
      %1700 = vset.pattern.permute.xlu0 0
      %1701 = vperm.xlu0 %1700, %v1576
      %v1702 = vpop.permute.xlu0 %1701
      %1705 = vset.pattern.permute.xlu0 0
      %1706 = vperm.xlu0 %1705, %v1577
      %v1707 = vpop.permute.xlu0 %1706
      %1710 = vset.pattern.permute.xlu0 0
      %1711 = vperm.xlu0 %1710, %v1578
      %v1712 = vpop.permute.xlu0 %1711
      %v1768 = vunpack.c.l.b16 %v1498
      %v1769 = vunpack.c.h.b16 %v1498
      %v1770 = vunpack.c.l.b16 %v1499
      %v1771 = vunpack.c.h.b16 %v1499
      %v1772 = vunpack.c.l.b16 %v1500
      %v1773 = vunpack.c.h.b16 %v1500
      %v1774 = vunpack.c.l.b16 %v1501
      %v1775 = vunpack.c.h.b16 %v1501
      %v1776 = vunpack.c.l.b16 %v1502
      %v1777 = vunpack.c.h.b16 %v1502
      %v1778 = vunpack.c.l.b16 %v1503
      %v1779 = vunpack.c.h.b16 %v1503
      %v1780 = vunpack.c.l.b16 %v1504
      %v1781 = vunpack.c.h.b16 %v1504
      %v1782 = vunpack.c.l.b16 %v1505
      %v1783 = vunpack.c.h.b16 %v1505
      %v1784 = vunpack.c.l.b16 %v1506
      %v1785 = vunpack.c.h.b16 %v1506
      %v1786 = vunpack.c.l.b16 %v1507
      %v1787 = vunpack.c.h.b16 %v1507
      %v1788 = vunpack.c.l.b16 %v1508
      %v1789 = vunpack.c.h.b16 %v1508
      %v1790 = vunpack.c.l.b16 %v1509
      %v1791 = vunpack.c.h.b16 %v1509
      %v1792 = vunpack.c.l.b16 %v1510
      %v1793 = vunpack.c.h.b16 %v1510
      %v1794 = vunpack.c.l.b16 %v1511
      %v1795 = vunpack.c.h.b16 %v1511
      %v1796 = vunpack.c.l.b16 %v1512
      %v1797 = vunpack.c.h.b16 %v1512
      %v1798 = vunpack.c.l.b16 %v1513
      %v1799 = vunpack.c.h.b16 %v1513
      %v1800 = vunpack.c.l.b16 %v1514
      %v1801 = vunpack.c.h.b16 %v1514
      %v1802 = vunpack.c.l.b16 %v1515
      %v1803 = vunpack.c.h.b16 %v1515
      %v1804 = vunpack.c.l.b16 %v1516
      %v1805 = vunpack.c.h.b16 %v1516
      %v1806 = vunpack.c.l.b16 %v1517
      %v1807 = vunpack.c.h.b16 %v1517
      %v1808 = vunpack.c.l.b16 %v1518
      %v1809 = vunpack.c.h.b16 %v1518
      %v1810 = vunpack.c.l.b16 %v1519
      %v1811 = vunpack.c.h.b16 %v1519
      %v1812 = vunpack.c.l.b16 %v1520
      %v1813 = vunpack.c.h.b16 %v1520
      %v1814 = vunpack.c.l.b16 %v1521
      %v1815 = vunpack.c.h.b16 %v1521
      %v1816 = vunpack.c.l.b16 %v1522
      %v1817 = vunpack.c.h.b16 %v1522
      %v1818 = vunpack.c.l.b16 %v1523
      %v1819 = vunpack.c.h.b16 %v1523
      %v1820 = vunpack.c.l.b16 %v1524
      %v1821 = vunpack.c.h.b16 %v1524
      %v1822 = vunpack.c.l.b16 %v1525
      %v1823 = vunpack.c.h.b16 %v1525
      %v1824 = vunpack.c.l.b16 %v1526
      %v1825 = vunpack.c.h.b16 %v1526
      %v1826 = vunpack.c.l.b16 %v1527
      %v1827 = vunpack.c.h.b16 %v1527
      %v1828 = vunpack.c.l.b16 %v1528
      %v1829 = vunpack.c.h.b16 %v1528
      %v1830 = vunpack.c.l.b16 %v1529
      %v1831 = vunpack.c.h.b16 %v1529
      %v1832 = vunpack.c.l.b16 %v1530
      %v1833 = vunpack.c.h.b16 %v1530
      %v1834 = vunpack.c.l.b16 %v1531
      %v1835 = vunpack.c.h.b16 %v1531
      %v1836 = vunpack.c.l.b16 %v1532
      %v1837 = vunpack.c.h.b16 %v1532
      %v1838 = vunpack.c.l.b16 %v1533
      %v1839 = vunpack.c.h.b16 %v1533
      %v1840 = vunpack.c.l.b16 %v1534
      %v1841 = vunpack.c.h.b16 %v1534
      %v1842 = vunpack.c.l.b16 %v1535
      %v1843 = vunpack.c.h.b16 %v1535
      %v1844 = vunpack.c.l.b16 %v1536
      %v1845 = vunpack.c.h.b16 %v1536
      %v1846 = vunpack.c.l.b16 %v1537
      %v1847 = vunpack.c.h.b16 %v1537
      %v1848 = vunpack.c.l.b16 %v1538
      %v1849 = vunpack.c.h.b16 %v1538
      %v1850 = vunpack.c.l.b16 %v1539
      %v1851 = vunpack.c.h.b16 %v1539
      %v1852 = vunpack.c.l.b16 %v1540
      %v1853 = vunpack.c.h.b16 %v1540
      %v1854 = vunpack.c.l.b16 %v1541
      %v1855 = vunpack.c.h.b16 %v1541
      %v1856 = vunpack.c.l.b16 %v1542
      %v1857 = vunpack.c.h.b16 %v1542
      %v1858 = vunpack.c.l.b16 %v1543
      %v1859 = vunpack.c.h.b16 %v1543
      %v1860 = vunpack.c.l.b16 %v1544
      %v1861 = vunpack.c.h.b16 %v1544
      %v1862 = vunpack.c.l.b16 %v1545
      %v1863 = vunpack.c.h.b16 %v1545
      %v1864 = vunpack.c.l.b16 %v1546
      %v1865 = vunpack.c.h.b16 %v1546
      %v1866 = vunpack.c.l.b16 %v1547
      %v1867 = vunpack.c.h.b16 %v1547
      %v1868 = vunpack.c.l.b16 %v1548
      %v1869 = vunpack.c.h.b16 %v1548
      %v1870 = vunpack.c.l.b16 %v1549
      %v1871 = vunpack.c.h.b16 %v1549
      %v1872 = vunpack.c.l.b16 %v1550
      %v1873 = vunpack.c.h.b16 %v1550
      %v1874 = vunpack.c.l.b16 %v1551
      %v1875 = vunpack.c.h.b16 %v1551
      %v1876 = vpack.c.b16 %v1772, %v1768
      %v1877 = vpack.c.b16 %v1773, %v1769
      %v1878 = vpack.c.b16 %v1774, %v1770
      %v1879 = vpack.c.b16 %v1775, %v1771
      %v1880 = vpack.c.b16 %v1780, %v1776
      %v1881 = vpack.c.b16 %v1781, %v1777
      %v1882 = vpack.c.b16 %v1782, %v1778
      %v1883 = vpack.c.b16 %v1783, %v1779
      %v1884 = vpack.c.b16 %v1788, %v1784
      %v1885 = vpack.c.b16 %v1789, %v1785
      %v1886 = vpack.c.b16 %v1790, %v1786
      %v1887 = vpack.c.b16 %v1791, %v1787
      %v1888 = vpack.c.b16 %v1796, %v1792
      %v1889 = vpack.c.b16 %v1797, %v1793
      %v1890 = vpack.c.b16 %v1798, %v1794
      %v1891 = vpack.c.b16 %v1799, %v1795
      %v1892 = vpack.c.b16 %v1804, %v1800
      %v1893 = vpack.c.b16 %v1805, %v1801
      %v1894 = vpack.c.b16 %v1806, %v1802
      %v1895 = vpack.c.b16 %v1807, %v1803
      %v1896 = vpack.c.b16 %v1812, %v1808
      %v1897 = vpack.c.b16 %v1813, %v1809
      %v1898 = vpack.c.b16 %v1814, %v1810
      %v1899 = vpack.c.b16 %v1815, %v1811
      %v1900 = vpack.c.b16 %v1820, %v1816
      %v1901 = vpack.c.b16 %v1821, %v1817
      %v1902 = vpack.c.b16 %v1822, %v1818
      %v1903 = vpack.c.b16 %v1823, %v1819
      %v1904 = vpack.c.b16 %v1828, %v1824
      %v1905 = vpack.c.b16 %v1829, %v1825
      %v1906 = vpack.c.b16 %v1830, %v1826
      %v1907 = vpack.c.b16 %v1831, %v1827
      %v1908 = vpack.c.b16 %v1836, %v1832
      %v1909 = vpack.c.b16 %v1837, %v1833
      %v1910 = vpack.c.b16 %v1838, %v1834
      %v1911 = vpack.c.b16 %v1839, %v1835
      %v1912 = vpack.c.b16 %v1844, %v1840
      %v1913 = vpack.c.b16 %v1845, %v1841
      %v1914 = vpack.c.b16 %v1846, %v1842
      %v1915 = vpack.c.b16 %v1847, %v1843
      %v1916 = vpack.c.b16 %v1852, %v1848
      %v1917 = vpack.c.b16 %v1853, %v1849
      %v1918 = vpack.c.b16 %v1854, %v1850
      %v1919 = vpack.c.b16 %v1855, %v1851
      %v1920 = vpack.c.b16 %v1860, %v1856
      %v1921 = vpack.c.b16 %v1861, %v1857
      %v1922 = vpack.c.b16 %v1862, %v1858
      %v1923 = vpack.c.b16 %v1863, %v1859
      %v1924 = vpack.c.b16 %v1868, %v1864
      %v1925 = vpack.c.b16 %v1869, %v1865
      %v1926 = vpack.c.b16 %v1870, %v1866
      %v1927 = vpack.c.b16 %v1871, %v1867
      %v1928 = vpack.c.b16 %v1872, %v1872
      %v1929 = vpack.c.b16 %v1873, %v1873
      %v1930 = vpack.c.b16 %v1874, %v1874
      %v1931 = vpack.c.b16 %v1875, %v1875
      %vm1974 = vcmask 392192
      %v1976 = vsel %vm1974, %v1879, 0
      %v1979 = vsel %vm1974, %v1883, 0
      %v1982 = vsel %vm1974, %v1887, 0
      %v1985 = vsel %vm1974, %v1891, 0
      %v1988 = vsel %vm1974, %v1895, 0
      %v1991 = vsel %vm1974, %v1899, 0
      %v1994 = vsel %vm1974, %v1903, 0
      %v1997 = vsel %vm1974, %v1907, 0
      %v2000 = vsel %vm1974, %v1911, 0
      %v2003 = vsel %vm1974, %v1915, 0
      %v2006 = vsel %vm1974, %v1919, 0
      %v2009 = vsel %vm1974, %v1923, 0
      %v2012 = vsel %vm1974, %v1927, 0
      %v2015 = vsel %vm1974, %v1931, 0
      %2017 = vmatprep.subr.bf16.mxu0 %v1445
      %2018 = vmatpush1.bf16.msra.mxu0 %v1444
      %2019 = vmatprep.subr.bf16.mxu0 %v1447
      %2020 = vmatpush1.bf16.msra.mxu0 %v1446
      %2021 = vmatprep.subr.bf16.mxu0 %v1449
      %2022 = vmatpush1.bf16.msra.mxu0 %v1448
      %2023 = vmatprep.subr.bf16.mxu0 %v1451
      %2024 = vmatpush1.bf16.msra.mxu0 %v1450
      %2025 = vmatprep.subr.bf16.mxu0 %v1453
      %2026 = vmatpush1.bf16.msra.mxu0 %v1452
      %2027 = vmatprep.subr.bf16.mxu0 %v1455
      %2028 = vmatpush1.bf16.msra.mxu0 %v1454
      %2029 = vmatprep.subr.bf16.mxu0 %v1457
      %2030 = vmatpush1.bf16.msra.mxu0 %v1456
      %2031 = vmatprep.subr.bf16.mxu0 %v1459
      %2032 = vmatpush1.bf16.msra.mxu0 %v1458
      %2033 = vmatprep.subr.bf16.mxu0 %v1461
      %2034 = vmatpush1.bf16.msra.mxu0 %v1460
      %2035 = vmatprep.subr.bf16.mxu0 %v1463
      %2036 = vmatpush1.bf16.msra.mxu0 %v1462
      %2037 = vmatprep.subr.bf16.mxu0 %v1465
      %2038 = vmatpush1.bf16.msra.mxu0 %v1464
      %2039 = vmatprep.subr.bf16.mxu0 %v1467
      %2040 = vmatpush1.bf16.msra.mxu0 %v1466
      %2041 = vmatprep.subr.bf16.mxu0 %v1469
      %2042 = vmatpush1.bf16.msra.mxu0 %v1468
      %2043 = vmatprep.subr.bf16.mxu0 %v1471
      %2044 = vmatpush1.bf16.msra.mxu0 %v1470
      %2045 = vmatprep.subr.bf16.mxu0 %v1473
      %2046 = vmatpush1.bf16.msra.mxu0 %v1472
      %2047 = vmatprep.subr.bf16.mxu0 %v1475
      %2048 = vmatpush1.bf16.msra.mxu0 %v1474
      %2049 = vmatprep.mubr.bf16.mxu0 %v1877
      %2050 = vmatmul.mubr.bf16.gmra.mrb[0].mxu0 %v1876
      %v2051 = vpop.f32.mrb[0].mxu0
      %v2052 = vadd.f32 %v1582, %v2051
      %v2053 = vpop.f32.mrb[0].mxu0
      %v2054 = vadd.f32 %v1582, %v2053
      %v2055 = vpop.f32.mrb[0].mxu0
      %v2056 = vadd.f32 %v1587, %v2055
      %v2057 = vpop.f32.mrb[0].mxu0
      %v2058 = vadd.f32 %v1587, %v2057
      %2059 = vmatprep.mubr.bf16.mxu0 %v1881
      %2060 = vmatmul.mubr.bf16.gmra.mrb[0].mxu0 %v1880
      %v2061 = vpop.f32.mrb[0].mxu0
      %v2062 = vadd.f32 %v1592, %v2061
      %v2063 = vpop.f32.mrb[0].mxu0
      %v2064 = vadd.f32 %v1592, %v2063
      %v2065 = vpop.f32.mrb[0].mxu0
      %v2066 = vadd.f32 %v1597, %v2065
      %v2067 = vpop.f32.mrb[0].mxu0
      %v2068 = vadd.f32 %v1597, %v2067
      %2069 = vmatprep.mubr.bf16.mxu0 %v1885
      %2070 = vmatmul.mubr.bf16.gmra.mrb[0].mxu0 %v1884
      %v2071 = vpop.f32.mrb[0].mxu0
      %v2072 = vadd.f32 %v1602, %v2071
      %v2073 = vpop.f32.mrb[0].mxu0
      %v2074 = vadd.f32 %v1602, %v2073
      %v2075 = vpop.f32.mrb[0].mxu0
      %v2076 = vadd.f32 %v1607, %v2075
      %v2077 = vpop.f32.mrb[0].mxu0
      %v2078 = vadd.f32 %v1607, %v2077
      %2079 = vmatprep.mubr.bf16.mxu0 %v1889
      %2080 = vmatmul.mubr.bf16.gmra.mrb[0].mxu0 %v1888
      %v2081 = vpop.f32.mrb[0].mxu0
      %v2082 = vadd.f32 %v1612, %v2081
      %v2083 = vpop.f32.mrb[0].mxu0
      %v2084 = vadd.f32 %v1612, %v2083
      %v2085 = vpop.f32.mrb[0].mxu0
      %v2086 = vadd.f32 %v1617, %v2085
      %v2087 = vpop.f32.mrb[0].mxu0
      %v2088 = vadd.f32 %v1617, %v2087
      %2089 = vmatprep.mubr.bf16.mxu0 %v1893
      %2090 = vmatmul.mubr.bf16.gmra.mrb[0].mxu0 %v1892
      %v2091 = vpop.f32.mrb[0].mxu0
      %v2092 = vadd.f32 %v1622, %v2091
      %v2093 = vpop.f32.mrb[0].mxu0
      %v2094 = vadd.f32 %v1622, %v2093
      %v2095 = vpop.f32.mrb[0].mxu0
      %v2096 = vadd.f32 %v1627, %v2095
      %v2097 = vpop.f32.mrb[0].mxu0
      %v2098 = vadd.f32 %v1627, %v2097
      %2099 = vmatprep.mubr.bf16.mxu0 %v1897
      %2100 = vmatmul.mubr.bf16.gmra.mrb[0].mxu0 %v1896
      %v2101 = vpop.f32.mrb[0].mxu0
      %v2102 = vadd.f32 %v1632, %v2101
      %v2103 = vpop.f32.mrb[0].mxu0
      %v2104 = vadd.f32 %v1632, %v2103
      %v2105 = vpop.f32.mrb[0].mxu0
      %v2106 = vadd.f32 %v1637, %v2105
      %v2107 = vpop.f32.mrb[0].mxu0
      %v2108 = vadd.f32 %v1637, %v2107
      %2109 = vmatprep.mubr.bf16.mxu0 %v1901
      %2110 = vmatmul.mubr.bf16.gmra.mrb[0].mxu0 %v1900
      %v2111 = vpop.f32.mrb[0].mxu0
      %v2112 = vadd.f32 %v1642, %v2111
      %v2113 = vpop.f32.mrb[0].mxu0
      %v2114 = vadd.f32 %v1642, %v2113
      %v2115 = vpop.f32.mrb[0].mxu0
      %v2116 = vadd.f32 %v1647, %v2115
      %v2117 = vpop.f32.mrb[0].mxu0
      %v2118 = vadd.f32 %v1647, %v2117
      %2119 = vmatprep.mubr.bf16.mxu0 %v1905
      %2120 = vmatmul.mubr.bf16.gmra.mrb[0].mxu0 %v1904
      %v2121 = vpop.f32.mrb[0].mxu0
      %v2122 = vadd.f32 %v1652, %v2121
      %v2123 = vpop.f32.mrb[0].mxu0
      %v2124 = vadd.f32 %v1652, %v2123
      %v2125 = vpop.f32.mrb[0].mxu0
      %v2126 = vadd.f32 %v1657, %v2125
      %v2127 = vpop.f32.mrb[0].mxu0
      %v2128 = vadd.f32 %v1657, %v2127
      %2129 = vmatprep.mubr.bf16.mxu0 %v1909
      %2130 = vmatmul.mubr.bf16.gmra.mrb[0].mxu0 %v1908
      %v2131 = vpop.f32.mrb[0].mxu0
      %v2132 = vadd.f32 %v1662, %v2131
      %v2133 = vpop.f32.mrb[0].mxu0
      %v2134 = vadd.f32 %v1662, %v2133
      %v2135 = vpop.f32.mrb[0].mxu0
      %v2136 = vadd.f32 %v1667, %v2135
      %v2137 = vpop.f32.mrb[0].mxu0
      %v2138 = vadd.f32 %v1667, %v2137
      %2139 = vmatprep.mubr.bf16.mxu0 %v1913
      %2140 = vmatmul.mubr.bf16.gmra.mrb[0].mxu0 %v1912
      %v2141 = vpop.f32.mrb[0].mxu0
      %v2142 = vadd.f32 %v1672, %v2141
      %v2143 = vpop.f32.mrb[0].mxu0
      %v2144 = vadd.f32 %v1672, %v2143
      %v2145 = vpop.f32.mrb[0].mxu0
      %v2146 = vadd.f32 %v1677, %v2145
      %v2147 = vpop.f32.mrb[0].mxu0
      %v2148 = vadd.f32 %v1677, %v2147
      %2149 = vmatprep.mubr.bf16.mxu0 %v1917
      %2150 = vmatmul.mubr.bf16.gmra.mrb[0].mxu0 %v1916
      %v2151 = vpop.f32.mrb[0].mxu0
      %v2152 = vadd.f32 %v1682, %v2151
      %v2153 = vpop.f32.mrb[0].mxu0
      %v2154 = vadd.f32 %v1682, %v2153
      %v2155 = vpop.f32.mrb[0].mxu0
      %v2156 = vadd.f32 %v1687, %v2155
      %v2157 = vpop.f32.mrb[0].mxu0
      %v2158 = vadd.f32 %v1687, %v2157
      %2159 = vmatprep.mubr.bf16.mxu0 %v1921
      %2160 = vmatmul.mubr.bf16.gmra.mrb[0].mxu0 %v1920
      %v2161 = vpop.f32.mrb[0].mxu0
      %v2162 = vadd.f32 %v1692, %v2161
      %v2163 = vpop.f32.mrb[0].mxu0
      %v2164 = vadd.f32 %v1692, %v2163
      %v2165 = vpop.f32.mrb[0].mxu0
      %v2166 = vadd.f32 %v1697, %v2165
      %v2167 = vpop.f32.mrb[0].mxu0
      %v2168 = vadd.f32 %v1697, %v2167
      %2169 = vmatprep.mubr.bf16.mxu0 %v1925
      %2170 = vmatmul.mubr.bf16.gmra.mrb[0].mxu0 %v1924
      %v2171 = vpop.f32.mrb[0].mxu0
      %v2172 = vadd.f32 %v1702, %v2171
      %v2173 = vpop.f32.mrb[0].mxu0
      %v2174 = vadd.f32 %v1702, %v2173
      %v2175 = vpop.f32.mrb[0].mxu0
      %v2176 = vadd.f32 %v1707, %v2175
      %v2177 = vpop.f32.mrb[0].mxu0
      %v2178 = vadd.f32 %v1707, %v2177
      %2179 = vmatprep.mubr.bf16.mxu0 %v1929
      %2180 = vmatmul.mubr.bf16.gmra.mrb[0].mxu0 %v1928
      %v2181 = vpop.f32.mrb[0].mxu0
      %v2182 = vadd.f32 %v1712, %v2181
      %v2183 = vpop.f32.mrb[0].mxu0
      %v2184 = vadd.f32 %v1712, %v2183
      %v2185 = vpop.f32.mrb[0].mxu0
      %v2186 = vpop.f32.mrb[0].mxu0
      %2187 = vdwg.mxu0
      %2188 = vmatprep.subr.bf16.mxu0 %v1477
      %2189 = vmatpush1.bf16.msra.mxu0 %v1476
      %2190 = vmatprep.subr.bf16.mxu0 %v1479
      %2191 = vmatpush1.bf16.msra.mxu0 %v1478
      %2192 = vmatprep.subr.bf16.mxu0 %v1481
      %2193 = vmatpush1.bf16.msra.mxu0 %v1480
      %2194 = vmatprep.subr.bf16.mxu0 %v1483
      %2195 = vmatpush1.bf16.msra.mxu0 %v1482
      %2196 = vmatprep.subr.bf16.mxu0 %v1485
      %2197 = vmatpush1.bf16.msra.mxu0 %v1484
      %2198 = vmatprep.subr.bf16.mxu0 %v1487
      %2199 = vmatpush1.bf16.msra.mxu0 %v1486
      %2200 = vmatprep.subr.bf16.mxu0 %v1489
      %2201 = vmatpush1.bf16.msra.mxu0 %v1488
      %2202 = vmatprep.subr.bf16.mxu0 %v1491
      %2203 = vmatpush1.bf16.msra.mxu0 %v1490
      %2204 = vmatprep.subr.bf16.mxu0 %v1493
      %2205 = vmatpush1.bf16.msra.mxu0 %v1492
      %2206 = vmatprep.subr.bf16.mxu0 %v1495
      %2207 = vmatpush1.bf16.msra.mxu0 %v1494
      %2208 = vmatprep.subr.bf16.mxu0 %v1497
      %2209 = vmatpush1.bf16.msra.mxu0 %v1496
      %2210 = vmatprep.subr.bf16.mxu0 0
      %2211 = vmatpush1.bf16.msra.mxu0 0
      %2212 = vmatprep.subr.bf16.mxu0 0
      %2213 = vmatpush1.bf16.msra.mxu0 0
      %2214 = vmatprep.subr.bf16.mxu0 0
      %2215 = vmatpush1.bf16.msra.mxu0 0
      %2216 = vmatprep.subr.bf16.mxu0 0
      %2217 = vmatpush1.bf16.msra.mxu0 0
      %2218 = vmatprep.subr.bf16.mxu0 0
      %2219 = vmatpush1.bf16.msra.mxu0 0
      %2220 = vmatprep.mubr.bf16.mxu0 %v1976
      %2221 = vmatmul.mubr.bf16.gmra.mrb[0].mxu0 %v1878
      %v2222 = vpop.f32.mrb[0].mxu0
      %v2223 = vadd.f32 %v2052, %v2222
      %v2224 = vpop.f32.mrb[0].mxu0
      %v2225 = vadd.f32 %v2054, %v2224
      %v2226 = vpop.f32.mrb[0].mxu0
      %v2227 = vadd.f32 %v2056, %v2226
      %v2228 = vpop.f32.mrb[0].mxu0
      %v2229 = vadd.f32 %v2058, %v2228
      %2230 = vmatprep.mubr.bf16.mxu0 %v1979
      %2231 = vmatmul.mubr.bf16.gmra.mrb[0].mxu0 %v1882
      %v2232 = vpop.f32.mrb[0].mxu0
      %v2233 = vadd.f32 %v2062, %v2232
      %v2234 = vpop.f32.mrb[0].mxu0
      %v2235 = vadd.f32 %v2064, %v2234
      %v2236 = vpop.f32.mrb[0].mxu0
      %v2237 = vadd.f32 %v2066, %v2236
      %v2238 = vpop.f32.mrb[0].mxu0
      %v2239 = vadd.f32 %v2068, %v2238
      %2240 = vmatprep.mubr.bf16.mxu0 %v1982
      %2241 = vmatmul.mubr.bf16.gmra.mrb[0].mxu0 %v1886
      %v2242 = vpop.f32.mrb[0].mxu0
      %v2243 = vadd.f32 %v2072, %v2242
      %v2244 = vpop.f32.mrb[0].mxu0
      %v2245 = vadd.f32 %v2074, %v2244
      %v2246 = vpop.f32.mrb[0].mxu0
      %v2247 = vadd.f32 %v2076, %v2246
      %v2248 = vpop.f32.mrb[0].mxu0
      %v2249 = vadd.f32 %v2078, %v2248
      %2250 = vmatprep.mubr.bf16.mxu0 %v1985
      %2251 = vmatmul.mubr.bf16.gmra.mrb[0].mxu0 %v1890
      %v2252 = vpop.f32.mrb[0].mxu0
      %v2253 = vadd.f32 %v2082, %v2252
      %v2254 = vpop.f32.mrb[0].mxu0
      %v2255 = vadd.f32 %v2084, %v2254
      %v2256 = vpop.f32.mrb[0].mxu0
      %v2257 = vadd.f32 %v2086, %v2256
      %v2258 = vpop.f32.mrb[0].mxu0
      %v2259 = vadd.f32 %v2088, %v2258
      %2260 = vmatprep.mubr.bf16.mxu0 %v1988
      %2261 = vmatmul.mubr.bf16.gmra.mrb[0].mxu0 %v1894
      %v2262 = vpop.f32.mrb[0].mxu0
      %v2263 = vadd.f32 %v2092, %v2262
      %v2264 = vpop.f32.mrb[0].mxu0
      %v2265 = vadd.f32 %v2094, %v2264
      %v2266 = vpop.f32.mrb[0].mxu0
      %v2267 = vadd.f32 %v2096, %v2266
      %v2268 = vpop.f32.mrb[0].mxu0
      %v2269 = vadd.f32 %v2098, %v2268
      %2270 = vmatprep.mubr.bf16.mxu0 %v1991
      %2271 = vmatmul.mubr.bf16.gmra.mrb[0].mxu0 %v1898
      %v2272 = vpop.f32.mrb[0].mxu0
      %v2273 = vadd.f32 %v2102, %v2272
      %v2274 = vpop.f32.mrb[0].mxu0
      %v2275 = vadd.f32 %v2104, %v2274
      %v2276 = vpop.f32.mrb[0].mxu0
      %v2277 = vadd.f32 %v2106, %v2276
      %v2278 = vpop.f32.mrb[0].mxu0
      %v2279 = vadd.f32 %v2108, %v2278
      %2280 = vmatprep.mubr.bf16.mxu0 %v1994
      %2281 = vmatmul.mubr.bf16.gmra.mrb[0].mxu0 %v1902
      %v2282 = vpop.f32.mrb[0].mxu0
      %v2283 = vadd.f32 %v2112, %v2282
      %v2284 = vpop.f32.mrb[0].mxu0
      %v2285 = vadd.f32 %v2114, %v2284
      %v2286 = vpop.f32.mrb[0].mxu0
      %v2287 = vadd.f32 %v2116, %v2286
      %v2288 = vpop.f32.mrb[0].mxu0
      %v2289 = vadd.f32 %v2118, %v2288
      %2290 = vmatprep.mubr.bf16.mxu0 %v1997
      %2291 = vmatmul.mubr.bf16.gmra.mrb[0].mxu0 %v1906
      %v2292 = vpop.f32.mrb[0].mxu0
      %v2293 = vadd.f32 %v2122, %v2292
      %v2294 = vpop.f32.mrb[0].mxu0
      %v2295 = vadd.f32 %v2124, %v2294
      %v2296 = vpop.f32.mrb[0].mxu0
      %v2297 = vadd.f32 %v2126, %v2296
      %v2298 = vpop.f32.mrb[0].mxu0
      %v2299 = vadd.f32 %v2128, %v2298
      %2300 = vmatprep.mubr.bf16.mxu0 %v2000
      %2301 = vmatmul.mubr.bf16.gmra.mrb[0].mxu0 %v1910
      %v2302 = vpop.f32.mrb[0].mxu0
      %v2303 = vadd.f32 %v2132, %v2302
      %v2304 = vpop.f32.mrb[0].mxu0
      %v2305 = vadd.f32 %v2134, %v2304
      %v2306 = vpop.f32.mrb[0].mxu0
      %v2307 = vadd.f32 %v2136, %v2306
      %v2308 = vpop.f32.mrb[0].mxu0
      %v2309 = vadd.f32 %v2138, %v2308
      %2310 = vmatprep.mubr.bf16.mxu0 %v2003
      %2311 = vmatmul.mubr.bf16.gmra.mrb[0].mxu0 %v1914
      %v2312 = vpop.f32.mrb[0].mxu0
      %v2313 = vadd.f32 %v2142, %v2312
      %v2314 = vpop.f32.mrb[0].mxu0
      %v2315 = vadd.f32 %v2144, %v2314
      %v2316 = vpop.f32.mrb[0].mxu0
      %v2317 = vadd.f32 %v2146, %v2316
      %v2318 = vpop.f32.mrb[0].mxu0
      %v2319 = vadd.f32 %v2148, %v2318
      %2320 = vmatprep.mubr.bf16.mxu0 %v2006
      %2321 = vmatmul.mubr.bf16.gmra.mrb[0].mxu0 %v1918
      %v2322 = vpop.f32.mrb[0].mxu0
      %v2323 = vadd.f32 %v2152, %v2322
      %v2324 = vpop.f32.mrb[0].mxu0
      %v2325 = vadd.f32 %v2154, %v2324
      %v2326 = vpop.f32.mrb[0].mxu0
      %v2327 = vadd.f32 %v2156, %v2326
      %v2328 = vpop.f32.mrb[0].mxu0
      %v2329 = vadd.f32 %v2158, %v2328
      %2330 = vmatprep.mubr.bf16.mxu0 %v2009
      %2331 = vmatmul.mubr.bf16.gmra.mrb[0].mxu0 %v1922
      %v2332 = vpop.f32.mrb[0].mxu0
      %v2333 = vadd.f32 %v2162, %v2332
      %v2334 = vpop.f32.mrb[0].mxu0
      %v2335 = vadd.f32 %v2164, %v2334
      %v2336 = vpop.f32.mrb[0].mxu0
      %v2337 = vadd.f32 %v2166, %v2336
      %v2338 = vpop.f32.mrb[0].mxu0
      %v2339 = vadd.f32 %v2168, %v2338
      %2340 = vmatprep.mubr.bf16.mxu0 %v2012
      %2341 = vmatmul.mubr.bf16.gmra.mrb[0].mxu0 %v1926
      %v2342 = vpop.f32.mrb[0].mxu0
      %v2343 = vadd.f32 %v2172, %v2342
      %v2344 = vpop.f32.mrb[0].mxu0
      %v2345 = vadd.f32 %v2174, %v2344
      %v2346 = vpop.f32.mrb[0].mxu0
      %v2347 = vadd.f32 %v2176, %v2346
      %v2348 = vpop.f32.mrb[0].mxu0
      %v2349 = vadd.f32 %v2178, %v2348
      %2350 = vmatprep.mubr.bf16.mxu0 %v2015
      %2351 = vmatmul.mubr.bf16.gmra.mrb[0].mxu0 %v1930
      %v2352 = vpop.f32.mrb[0].mxu0
      %v2353 = vadd.f32 %v2182, %v2352
      %v2354 = vpop.f32.mrb[0].mxu0
      %v2355 = vadd.f32 %v2184, %v2354
      %v2356 = vpop.f32.mrb[0].mxu0
      %v2357 = vpop.f32.mrb[0].mxu0
      %2358 = vdwg.mxu0
      %2359 = vst [vmem:[%s253] sm:$0xff] %v2223
      %vm2360 = vcmask 556032
      %2361 = vst.msk [vmem:[%s253 + $0x8] sm:$0xff] %vm2360, %v2225
      %2362 = vst [vmem:[%s253 + $0x10] sm:$0xff] %v2227
      %2363 = vst.msk [vmem:[%s253 + $0x18] sm:$0xff] %vm2360, %v2229
      %2364 = vst [vmem:[%s253 + $0x20] sm:$0xff] %v2233
      %2365 = vst.msk [vmem:[%s253 + $0x28] sm:$0xff] %vm2360, %v2235
      %2366 = vst [vmem:[%s253 + $0x30] sm:$0xff] %v2237
      %2367 = vst.msk [vmem:[%s253 + $0x38] sm:$0xff] %vm2360, %v2239
      %2368 = vst [vmem:[%s253 + $0x40] sm:$0xff] %v2243
      %2369 = vst.msk [vmem:[%s253 + $0x48] sm:$0xff] %vm2360, %v2245
      %2370 = vst [vmem:[%s253 + $0x50] sm:$0xff] %v2247
      %2371 = vst.msk [vmem:[%s253 + $0x58] sm:$0xff] %vm2360, %v2249
      %2372 = vst [vmem:[%s253 + $0x60] sm:$0xff] %v2253
      %2373 = vst.msk [vmem:[%s253 + $0x68] sm:$0xff] %vm2360, %v2255
      %2374 = vst [vmem:[%s253 + $0x70] sm:$0xff] %v2257
      %2375 = vst.msk [vmem:[%s253 + $0x78] sm:$0xff] %vm2360, %v2259
      %2376 = vst [vmem:[%s253 + $0x80] sm:$0xff] %v2263
      %2377 = vst.msk [vmem:[%s253 + $0x88] sm:$0xff] %vm2360, %v2265
      %2378 = vst [vmem:[%s253 + $0x90] sm:$0xff] %v2267
      %2379 = vst.msk [vmem:[%s253 + $0x98] sm:$0xff] %vm2360, %v2269
      %2380 = vst [vmem:[%s253 + $0xa0] sm:$0xff] %v2273
      %2381 = vst.msk [vmem:[%s253 + $0xa8] sm:$0xff] %vm2360, %v2275
      %2382 = vst [vmem:[%s253 + $0xb0] sm:$0xff] %v2277
      %2383 = vst.msk [vmem:[%s253 + $0xb8] sm:$0xff] %vm2360, %v2279
      %2384 = vst [vmem:[%s253 + $0xc0] sm:$0xff] %v2283
      %2385 = vst.msk [vmem:[%s253 + $0xc8] sm:$0xff] %vm2360, %v2285
      %2386 = vst [vmem:[%s253 + $0xd0] sm:$0xff] %v2287
      %2387 = vst.msk [vmem:[%s253 + $0xd8] sm:$0xff] %vm2360, %v2289
      %2388 = vst [vmem:[%s253 + $0xe0] sm:$0xff] %v2293
      %2389 = vst.msk [vmem:[%s253 + $0xe8] sm:$0xff] %vm2360, %v2295
      %2390 = vst [vmem:[%s253 + $0xf0] sm:$0xff] %v2297
      %2391 = vst.msk [vmem:[%s253 + $0xf8] sm:$0xff] %vm2360, %v2299
      %2392 = vst [vmem:[%s253 + $0x100] sm:$0xff] %v2303
      %2393 = vst.msk [vmem:[%s253 + $0x108] sm:$0xff] %vm2360, %v2305
      %2394 = vst [vmem:[%s253 + $0x110] sm:$0xff] %v2307
      %2395 = vst.msk [vmem:[%s253 + $0x118] sm:$0xff] %vm2360, %v2309
      %2396 = vst [vmem:[%s253 + $0x120] sm:$0xff] %v2313
      %2397 = vst.msk [vmem:[%s253 + $0x128] sm:$0xff] %vm2360, %v2315
      %2398 = vst [vmem:[%s253 + $0x130] sm:$0xff] %v2317
      %2399 = vst.msk [vmem:[%s253 + $0x138] sm:$0xff] %vm2360, %v2319
      %2400 = vst [vmem:[%s253 + $0x140] sm:$0xff] %v2323
      %2401 = vst.msk [vmem:[%s253 + $0x148] sm:$0xff] %vm2360, %v2325
      %2402 = vst [vmem:[%s253 + $0x150] sm:$0xff] %v2327
      %2403 = vst.msk [vmem:[%s253 + $0x158] sm:$0xff] %vm2360, %v2329
      %2404 = vst [vmem:[%s253 + $0x160] sm:$0xff] %v2333
      %2405 = vst.msk [vmem:[%s253 + $0x168] sm:$0xff] %vm2360, %v2335
      %2406 = vst [vmem:[%s253 + $0x170] sm:$0xff] %v2337
      %2407 = vst.msk [vmem:[%s253 + $0x178] sm:$0xff] %vm2360, %v2339
      %2408 = vst [vmem:[%s253 + $0x180] sm:$0xff] %v2343
      %2409 = vst.msk [vmem:[%s253 + $0x188] sm:$0xff] %vm2360, %v2345
      %2410 = vst [vmem:[%s253 + $0x190] sm:$0xff] %v2347
      %2411 = vst.msk [vmem:[%s253 + $0x198] sm:$0xff] %vm2360, %v2349
      %2412 = vst [vmem:[%s253 + $0x1a0] sm:$0xff] %v2353
      %2413 = vst.msk [vmem:[%s253 + $0x1a8] sm:$0xff] %vm2360, %v2355
      %s2414 = smul.u32 27, %s16
      %p2415 = scmp.lt.s32.totalorder %s2414, 53
      %s2416 = scalar_select %p2415, %s2414, 53
      %s2417 = smul.addr %s2416, 2
      %s2418 = smul.addr %s2417, 8
      %s2419 = scalar_lea.vmem %s5, %s2418
      // Predicated region
      $region41: #{fused_bn_add_relu_conv_bn.1} parent=39 // pred_check
        %p2420 = pneg %p149
      $region42: #{fused_bn_add_relu_conv_bn.1} parent=39 // pred_check_branch
        %2422 = sbr.rel (%p2420) target = $region44
      $region43: #{fused_bn_add_relu_conv_bn.1} parent=39 // pred_region
        %s2423 = smul.u32 27, %s16
      $region44: #{fused_bn_add_relu_conv_bn.1} parent=39 // pred_fallthru
        _
    $region40: #{fused_bn_add_relu_conv_bn.1} parent=5 // pred_fallthru
      _
    %p2424 = scmp.le.s32.totalorder 2, %s11
    // Predicated region
    $region45: #{fused_bn_add_relu_conv_bn.1} parent=5 // pred_check
      %p2425 = pneg %p2424
    $region46: #{fused_bn_add_relu_conv_bn.1} parent=5 // pred_check_branch
      %2427 = sbr.rel (%p2425) target = $region48
    $region47: #{fused_bn_add_relu_conv_bn.1} parent=5 // pred_region
      %s2428 = ssub.s32 %s11, 2
      // Predicated region
      $region49: #{fused_bn_add_relu_conv_bn.1} parent=47 // pred_check
        %p2429 = pneg %p155
      $region50: #{fused_bn_add_relu_conv_bn.1} parent=47 // pred_check_branch
        %2431 = sbr.rel (%p2429) target = $region52
      $region51: #{fused_bn_add_relu_conv_bn.1} parent=47 // pred_region
        %s2432 = smul.u32 27, %s17
        %p2433 = scmp.lt.s32.totalorder %s2432, 53
        %s2434 = scalar_select %p2433, %s2432, 53
        %s2435 = smul.addr %s2434, 2
        %s2436 = smul.addr %s2435, 8
        %s2437 = scalar_lea.vmem %s5, %s2436
      $region52: #{fused_bn_add_relu_conv_bn.1} parent=47 // pred_fallthru
        _
    $region48: #{fused_bn_add_relu_conv_bn.1} parent=5 // pred_fallthru
      _
  $region6: #{fused_bn_add_relu_conv_bn.1} parent=0 // loop_footer
    %s15 = sadd.s32 1, %s11
  $region7: #{fused_bn_add_relu_conv_bn.1} parent=0 // loop_footer_branch
    %10 = sbr.rel target = $region3
  $region8: #{fused_bn_add_relu_conv_bn.1} parent=0 // loop_exit
    _

</llo_original>
